<compile_context>
chip_gen: v7x
topology: tpu7x:2x2x1
jax: 0.10.0
libtpu: 0.0.40
codegen_flags: <defaults>
</compile_context>

<pallas_src>
import jax
import jax.numpy as jnp
from jax.experimental import pallas as pl
from jax.experimental.pallas import tpu as pltpu

NUM_EDGE_FEATURES = 3
NUM_NODE_FEATURES = 12
HIDDEN_SIZE = 32
TARGET_SIZE = 1
NEG_SLOPE = 0.2          # GATConv default LeakyReLU slope
BIG = 1e30               # finite "minus infinity" (avoids 0 * inf = NaN)
TINY = 1e-30             # guards 0/0 on padded nodes / empty graphs


# ----------------------------------------------------------------------------
# Pallas kernel: one graph per grid program.
# ----------------------------------------------------------------------------
def cohesion_gnn_kernel(
    x_ref, ea_ref, src_ref, dst_ref, dstr_ref, nnode_ref,
    w_src_ref, w_edge_ref,
    att_src_ref, att_dst_ref, att_edge_ref, b_conv_ref,
    w_gate_ref, b_gate_ref, w_lin_ref, b_lin_ref,
    out_ref,
):
    f32 = jnp.float32
    x = x_ref[0]                       # [N, F]    padded nodes are zero rows
    ea = ea_ref[0]                     # [E, EF]   padded edges are zero rows
    src_c = src_ref[0]                 # [E, 1]    int32 local src id (-1 on pad)
    dst_c = dst_ref[0]                 # [E, 1]    int32 local dst id (-1 on pad)
    dst_r = dstr_ref[0]                # [1, E]    same dst ids, lane-major
    nn = nnode_ref[0]                  # [1, 1]    int32 #real nodes this graph

    N = x.shape[0]
    E = src_c.shape[0]

    # ------- build gather/scatter one-hots in VMEM (no O(E*N) HBM traffic) --
    col_n = jax.lax.broadcasted_iota(jnp.int32, (E, N), 1)
    S = (col_n == src_c).astype(f32)                                     # [E, N]
    D = (col_n == dst_c).astype(f32)                                     # [E, N]
    row_n = jax.lax.broadcasted_iota(jnp.int32, (N, E), 0)
    Dt = (row_n == dst_r).astype(f32)                                    # [N, E]
    node_iota = jax.lax.broadcasted_iota(jnp.int32, (N, 1), 0)
    nmask = (node_iota < nn).astype(f32)                                 # [N, 1]

    # ---------------- GATConv projections (MXU) ----------------
    xp = jnp.dot(x, w_src_ref[...], preferred_element_type=f32)          # [N, H]
    ep = jnp.dot(ea, w_edge_ref[...], preferred_element_type=f32)        # [E, H]

    # width-1 attention terms on the VPU/XLU (keep them off the MXU)
    a_dst = jnp.sum(xp * att_dst_ref[...], axis=-1, keepdims=True)       # [N, 1]
    a_edge = jnp.sum(ep * att_edge_ref[...], axis=-1, keepdims=True)     # [E, 1]

    # per-edge gathers as MXU matmuls against the one-hots
    xp_src = jnp.dot(S, xp, preferred_element_type=f32)                  # [E, H]
    a_src_e = jnp.sum(xp_src * att_src_ref[...], axis=-1, keepdims=True)  # [E, 1]
    a_dst_e = jnp.dot(D, a_dst, preferred_element_type=f32)              # [E, 1]

    alpha = a_src_e + a_dst_e + a_edge                                   # [E, 1]
    alpha = jnp.where(alpha > 0, alpha, NEG_SLOPE * alpha)               # LeakyReLU

    # ------------- per-destination softmax over incoming edges -------------
    # Additive mask from D (padded edges have all-zero rows -> excluded).
    dmax = jnp.max(alpha + (D - 1.0) * BIG, axis=0, keepdims=True)       # [1, N]
    # per-edge gather of its destination's max (one-hot row => sum == gather)
    dmax_e = jnp.sum(D * dmax, axis=1, keepdims=True)                    # [E, 1]
    aexp = jnp.exp(alpha - dmax_e)                                       # [E, 1]

    # scatter-add to nodes as MXU matmuls (numerator + softmax denominator);
    # normalize once at node level -> no per-edge denominator gather needed.
    node_num = jnp.dot(Dt, aexp * xp_src, preferred_element_type=f32)    # [N, H]
    node_den = jnp.dot(Dt, aexp, preferred_element_type=f32)             # [N, 1]
    node_out = node_num / jnp.maximum(node_den, TINY) + b_conv_ref[...]  # [N, H]
    h = jnp.maximum(node_out, 0.0)                                       # ReLU
    # TODO(synk): F.dropout is identity in eval mode; training-mode dropout not implemented.

    # ------------- GlobalAttention pooling over this graph's nodes ---------
    gate = jnp.sum(h * w_gate_ref[...], axis=-1, keepdims=True) + b_gate_ref[...]  # [N, 1]
    gmax = jnp.max(gate + (nmask - 1.0) * BIG, axis=0, keepdims=True)    # [1, 1]
    # min(.,0) is a no-op for real graphs; it keeps empty graphs finite.
    gexp = nmask * jnp.exp(jnp.minimum(gate - gmax, 0.0))                # [N, 1]
    gsum = jnp.maximum(jnp.sum(gexp, axis=0, keepdims=True), TINY)       # [1, 1]
    pooled = jnp.sum((gexp / gsum) * h, axis=0, keepdims=True)           # [1, H]

    # ------------- final Linear + sigmoid ----------------------------------
    logit = jnp.sum(pooled * w_lin_ref[...], axis=-1, keepdims=True) + b_lin_ref[...]  # [1,1]
    prob = 1.0 / (1.0 + jnp.exp(-logit))                                 # [1, 1]
    # lane-dense (8,128) store; wrapper slices [g, 0, 0]
    out_ref[0] = jnp.broadcast_to(prob, (8, 128))


# ----------------------------------------------------------------------------
# Host-side preprocessing
# ----------------------------------------------------------------------------
def add_self_loops_mean(edge_index, edge_attr, num_nodes):
    """PyG GATConv add_self_loops with fill_value='mean' (mean over incoming)."""
    src, dst = edge_index[0], edge_index[1]
    E = src.shape[0]
    deg = jax.ops.segment_sum(jnp.ones((E,), jnp.float32), dst, num_segments=num_nodes)
    loop_attr = (jax.ops.segment_sum(edge_attr, dst, num_segments=num_nodes)
                 / jnp.maximum(deg, 1.0)[:, None])
    loop = jnp.arange(num_nodes, dtype=src.dtype)
    return (jnp.concatenate([src, loop]),
            jnp.concatenate([dst, loop]),
            jnp.concatenate([edge_attr, loop_attr], axis=0))


def _round_up(v, m):
    return ((v + m - 1) // m) * m


def cohesion_gnn_forward(x, edge_index, edge_attr, batch, params, num_graphs):
    """Batched forward. Nodes must be grouped by graph (PyG batching order)."""
    N, F = x.shape
    EF = edge_attr.shape[1]
    G = num_graphs

    src, dst, ea = add_self_loops_mean(edge_index, edge_attr, N)
    E_full = int(src.shape[0])

    # per-graph node bookkeeping
    nodes_per_graph = jax.ops.segment_sum(jnp.ones((N,), jnp.int32), batch,
                                          num_segments=G)
    node_off = jnp.concatenate([jnp.zeros((1,), nodes_per_graph.dtype),
                                jnp.cumsum(nodes_per_graph)[:-1]])
    local_node = jnp.arange(N, dtype=jnp.int32) - node_off[batch]

    # per-graph edge bookkeeping (group edges by graph, rank within graph)
    e_graph = batch[dst]
    order = jnp.argsort(e_graph)
    e_graph_s = e_graph[order]
    src_s, dst_s, ea_s = src[order], dst[order], ea[order]
    edges_per_graph = jax.ops.segment_sum(jnp.ones((E_full,), jnp.int32),
                                          e_graph_s, num_segments=G)
    edge_off = jnp.concatenate([jnp.zeros((1,), edges_per_graph.dtype),
                                jnp.cumsum(edges_per_graph)[:-1]])
    e_rank = jnp.arange(E_full, dtype=jnp.int32) - edge_off[e_graph_s]
    lsrc = (src_s - node_off[e_graph_s]).astype(jnp.int32)
    ldst = (dst_s - node_off[e_graph_s]).astype(jnp.int32)

    # lane-dense node axis (multiple of 128), sublane-aligned edge axis (mult of 8)
    n_pad = max(128, _round_up(int(jnp.max(nodes_per_graph)), 128))
    e_pad = max(8, _round_up(int(jnp.max(edges_per_graph)), 8))

    # padded per-graph tensors; edge endpoints stay as compact int32 indices
    # (-1 on padded edges) -> one-hots rebuilt inside the kernel, no O(E*N) DMA.
    xg = jnp.zeros((G, n_pad, F), jnp.float32).at[batch, local_node].set(x)
    eag = jnp.zeros((G, e_pad, EF), jnp.float32).at[e_graph_s, e_rank].set(ea_s)
    src_col = jnp.full((G, e_pad, 1), -1, jnp.int32).at[e_graph_s, e_rank, 0].set(lsrc)
    dst_col = jnp.full((G, e_pad, 1), -1, jnp.int32).at[e_graph_s, e_rank, 0].set(ldst)
    dst_row = jnp.full((G, 1, e_pad), -1, jnp.int32).at[e_graph_s, 0, e_rank].set(ldst)
    nnode = nodes_per_graph.astype(jnp.int32).reshape(G, 1, 1)

    # weight rows for VPU lane-reduce form
    att_src_row = params["att_src"].T      # [1, H]
    att_dst_row = params["att_dst"].T      # [1, H]
    att_edge_row = params["att_edge"].T    # [1, H]
    w_gate_row = params["w_gate"].T        # [1, H]
    w_lin_row = params["w_lin"].T          # [1, H]

    inputs = (xg, eag, src_col, dst_col, dst_row, nnode,
              params["w_src"], params["w_edge"],
              att_src_row, att_dst_row, att_edge_row, params["b_conv"],
              w_gate_row, params["b_gate"], w_lin_row, params["b_lin"])

    graph3 = lambda shape: pl.BlockSpec((1,) + tuple(shape[1:]), lambda g: (g, 0, 0))
    wspec = lambda a: pl.BlockSpec(a.shape, lambda g: (0, 0))
    in_specs = [graph3(a.shape) for a in inputs[:6]] + [wspec(a) for a in inputs[6:]]

    out = pl.pallas_call(
        cohesion_gnn_kernel,
        out_shape=jax.ShapeDtypeStruct((G, 8, 128), jnp.float32),
        grid=(G,),
        in_specs=in_specs,
        out_specs=pl.BlockSpec((1, 8, 128), lambda g: (g, 0, 0)),
        compiler_params=pltpu.CompilerParams(dimension_semantics=("parallel",)),
    )(*inputs)
    return out[:, 0, :TARGET_SIZE]                                        # [G, 1]


# ----------------------------------------------------------------------------
# Pure-JAX reference (segment-op formulation) for sanity check
# ----------------------------------------------------------------------------
def reference_forward(params, x, edge_index, edge_attr, batch, num_graphs):
    N = x.shape[0]
    src, dst, ea = add_self_loops_mean(edge_index, edge_attr, N)
    xp = x @ params["w_src"]
    ep = ea @ params["w_edge"]
    a_src = (xp @ params["att_src"])[:, 0]
    a_dst = (xp @ params["att_dst"])[:, 0]
    a_edge = (ep @ params["att_edge"])[:, 0]
    alpha = a_src[src] + a_dst[dst] + a_edge
    alpha = jnp.where(alpha > 0, alpha, NEG_SLOPE * alpha)
    amax = jax.ops.segment_max(alpha, dst, num_segments=N)
    aexp = jnp.exp(alpha - amax[dst])
    asum = jax.ops.segment_sum(aexp, dst, num_segments=N)
    anorm = aexp / asum[dst]
    node_out = jax.ops.segment_sum(anorm[:, None] * xp[src], dst, num_segments=N)
    h = jnp.maximum(node_out + params["b_conv"], 0.0)
    gate = (h @ params["w_gate"] + params["b_gate"])[:, 0]
    gmax = jax.ops.segment_max(gate, batch, num_segments=num_graphs)
    gexp = jnp.exp(gate - gmax[batch])
    gsum = jax.ops.segment_sum(gexp, batch, num_segments=num_graphs)
    gnorm = gexp / gsum[batch]
    pooled = jax.ops.segment_sum(gnorm[:, None] * h, batch, num_segments=num_graphs)
    logits = pooled @ params["w_lin"] + params["b_lin"]
    return 1.0 / (1.0 + jnp.exp(-logits))


# ----------------------------------------------------------------------------
# Deterministic parameter init (synthetic weights, module shapes)
# ----------------------------------------------------------------------------
def init_params(key):
    ks = jax.random.split(key, 10)

    def w(k, shape):
        return (0.1 * jax.random.normal(k, shape)).astype(jnp.float32)

    return dict(
        w_src=w(ks[0], (NUM_NODE_FEATURES, HIDDEN_SIZE)),   # GATConv lin (src==dst)
        att_src=w(ks[1], (HIDDEN_SIZE, 1)),                  # GATConv att_src
        att_dst=w(ks[2], (HIDDEN_SIZE, 1)),                  # GATConv att_dst
        w_edge=w(ks[3], (NUM_EDGE_FEATURES, HIDDEN_SIZE)),   # GATConv lin_edge
        att_edge=w(ks[4], (HIDDEN_SIZE, 1)),                 # GATConv att_edge
        b_conv=w(ks[5], (1, HIDDEN_SIZE)),                   # GATConv bias
        w_gate=w(ks[6], (HIDDEN_SIZE, 1)),                   # self.att Linear(32,1)
        b_gate=w(ks[7], (1, 1)),
        w_lin=w(ks[8], (HIDDEN_SIZE, 1)),                    # self.linear Linear(32,1)
        b_lin=w(ks[9], (1, 1)),
    )


if __name__ == "__main__":
    key = jax.random.PRNGKey(0)
    kx, ke, kp = jax.random.split(key, 3)

    num_graphs = 2
    nodes_per_graph = 8
    N = num_graphs * nodes_per_graph                         # 16 nodes total

    x = jax.random.normal(kx, (N, NUM_NODE_FEATURES), jnp.float32)

    # bidirectional ring edges within each graph (no self loops in the input)
    src_list, dst_list = [], []
    for g in range(num_graphs):
        base = g * nodes_per_graph
        for i in range(nodes_per_graph):
            a = base + i
            b = base + (i + 1) % nodes_per_graph
            src_list += [a, b]
            dst_list += [b, a]
    edge_index = jnp.array([src_list, dst_list], dtype=jnp.int32)   # [2, 32]
    E = edge_index.shape[1]
    edge_attr = jax.random.normal(ke, (E, NUM_EDGE_FEATURES), jnp.float32)
    batch = jnp.repeat(jnp.arange(num_graphs, dtype=jnp.int32), nodes_per_graph)

    params = init_params(kp)

    out = cohesion_gnn_forward(x, edge_index, edge_attr, batch, params, num_graphs)
    out = jax.block_until_ready(out)

    ref = reference_forward(params, x, edge_index, edge_attr, batch, num_graphs)
    assert out.shape == (num_graphs, TARGET_SIZE)
    assert bool(jnp.all(jnp.isfinite(out)))
    assert bool(jnp.allclose(out, ref, atol=1e-5, rtol=1e-5)), (out, ref)
    print("KERNEL_OK")
</pallas_src>

<mosaic_0001>
module attributes {stable_mosaic.version = 11 : i64} {
  func.func @cohesion_gnn_kernel(%arg0: i32, %arg1: memref<1x128x12xf32, #tpu.memory_space<vmem>>, %arg2: memref<1x24x3xf32, #tpu.memory_space<vmem>>, %arg3: memref<1x24x1xi32, #tpu.memory_space<vmem>>, %arg4: memref<1x24x1xi32, #tpu.memory_space<vmem>>, %arg5: memref<1x1x24xi32, #tpu.memory_space<vmem>>, %arg6: memref<1x1x1xi32, #tpu.memory_space<vmem>>, %arg7: memref<12x32xf32, #tpu.memory_space<vmem>>, %arg8: memref<3x32xf32, #tpu.memory_space<vmem>>, %arg9: memref<1x32xf32, #tpu.memory_space<vmem>>, %arg10: memref<1x32xf32, #tpu.memory_space<vmem>>, %arg11: memref<1x32xf32, #tpu.memory_space<vmem>>, %arg12: memref<1x32xf32, #tpu.memory_space<vmem>>, %arg13: memref<1x32xf32, #tpu.memory_space<vmem>>, %arg14: memref<1x1xf32, #tpu.memory_space<vmem>>, %arg15: memref<1x32xf32, #tpu.memory_space<vmem>>, %arg16: memref<1x1xf32, #tpu.memory_space<vmem>>, %arg17: memref<1x8x128xf32, #tpu.memory_space<vmem>>) attributes {dimension_semantics = [#tpu.dimension_semantics<parallel>], iteration_bounds = array<i64: 2>, scalar_prefetch = 0 : i64, scratch_operands = 0 : i64, tpu.core_type = #tpu.core_type<tc>, window_params = [{transform_indices = @transform_0, window_bounds = array<i64: 1, 128, 12>}, {transform_indices = @transform_1, window_bounds = array<i64: 1, 24, 3>}, {transform_indices = @transform_2, window_bounds = array<i64: 1, 24, 1>}, {transform_indices = @transform_3, window_bounds = array<i64: 1, 24, 1>}, {transform_indices = @transform_4, window_bounds = array<i64: 1, 1, 24>}, {transform_indices = @transform_5, window_bounds = array<i64: 1, 1, 1>}, {pipeline_mode = #tpu.pipeline_mode<synchronous>, transform_indices = @transform_6, window_bounds = array<i64: 12, 32>}, {pipeline_mode = #tpu.pipeline_mode<synchronous>, transform_indices = @transform_7, window_bounds = array<i64: 3, 32>}, {pipeline_mode = #tpu.pipeline_mode<synchronous>, transform_indices = @transform_8, window_bounds = array<i64: 1, 32>}, {pipeline_mode = #tpu.pipeline_mode<synchronous>, transform_indices = @transform_9, window_bounds = array<i64: 1, 32>}, {pipeline_mode = #tpu.pipeline_mode<synchronous>, transform_indices = @transform_10, window_bounds = array<i64: 1, 32>}, {pipeline_mode = #tpu.pipeline_mode<synchronous>, transform_indices = @transform_11, window_bounds = array<i64: 1, 32>}, {pipeline_mode = #tpu.pipeline_mode<synchronous>, transform_indices = @transform_12, window_bounds = array<i64: 1, 32>}, {pipeline_mode = #tpu.pipeline_mode<synchronous>, transform_indices = @transform_13, window_bounds = array<i64: 1, 1>}, {pipeline_mode = #tpu.pipeline_mode<synchronous>, transform_indices = @transform_14, window_bounds = array<i64: 1, 32>}, {pipeline_mode = #tpu.pipeline_mode<synchronous>, transform_indices = @transform_15, window_bounds = array<i64: 1, 1>}, {transform_indices = @transform_16, window_bounds = array<i64: 1, 8, 128>}]} {
    %c0 = arith.constant 0 : index
    %c0_0 = arith.constant 0 : index
    %c0_1 = arith.constant 0 : index
    %0 = vector.load %arg1[%c0, %c0_0, %c0_1] : memref<1x128x12xf32, #tpu.memory_space<vmem>>, vector<1x128x12xf32>
    %1 = vector.shape_cast %0 : vector<1x128x12xf32> to vector<128x12xf32>
    %c0_2 = arith.constant 0 : index
    %c0_3 = arith.constant 0 : index
    %c0_4 = arith.constant 0 : index
    %2 = vector.load %arg2[%c0_2, %c0_3, %c0_4] : memref<1x24x3xf32, #tpu.memory_space<vmem>>, vector<1x24x3xf32>
    %3 = vector.shape_cast %2 : vector<1x24x3xf32> to vector<24x3xf32>
    %c0_5 = arith.constant 0 : index
    %c0_6 = arith.constant 0 : index
    %c0_7 = arith.constant 0 : index
    %4 = vector.load %arg3[%c0_5, %c0_6, %c0_7] : memref<1x24x1xi32, #tpu.memory_space<vmem>>, vector<1x24x1xi32>
    %5 = vector.shape_cast %4 : vector<1x24x1xi32> to vector<24x1xi32>
    %c0_8 = arith.constant 0 : index
    %c0_9 = arith.constant 0 : index
    %c0_10 = arith.constant 0 : index
    %6 = vector.load %arg4[%c0_8, %c0_9, %c0_10] : memref<1x24x1xi32, #tpu.memory_space<vmem>>, vector<1x24x1xi32>
    %7 = vector.shape_cast %6 : vector<1x24x1xi32> to vector<24x1xi32>
    %c0_11 = arith.constant 0 : index
    %c0_12 = arith.constant 0 : index
    %c0_13 = arith.constant 0 : index
    %8 = vector.load %arg5[%c0_11, %c0_12, %c0_13] : memref<1x1x24xi32, #tpu.memory_space<vmem>>, vector<1x1x24xi32>
    %9 = vector.shape_cast %8 : vector<1x1x24xi32> to vector<1x24xi32>
    %c0_14 = arith.constant 0 : index
    %c0_15 = arith.constant 0 : index
    %c0_16 = arith.constant 0 : index
    %10 = vector.load %arg6[%c0_14, %c0_15, %c0_16] : memref<1x1x1xi32, #tpu.memory_space<vmem>>, vector<1x1x1xi32>
    %11 = vector.shape_cast %10 : vector<1x1x1xi32> to vector<1x1xi32>
    %12 = tpu.iota {dimensions = array<i32: 1>} : vector<24x128xi32>
    %13 = vector.broadcast %5 : vector<24x1xi32> to vector<24x128xi32>
    %14 = arith.cmpi eq, %12, %13 : vector<24x128xi32>
    %15 = arith.extui %14 : vector<24x128xi1> to vector<24x128xi32>
    %16 = arith.sitofp %15 : vector<24x128xi32> to vector<24x128xf32>
    %17 = vector.broadcast %7 : vector<24x1xi32> to vector<24x128xi32>
    %18 = arith.cmpi eq, %12, %17 : vector<24x128xi32>
    %19 = arith.extui %18 : vector<24x128xi1> to vector<24x128xi32>
    %20 = arith.sitofp %19 : vector<24x128xi32> to vector<24x128xf32>
    %21 = tpu.iota {dimensions = array<i32: 0>} : vector<128x24xi32>
    %22 = vector.broadcast %9 : vector<1x24xi32> to vector<128x24xi32>
    %23 = arith.cmpi eq, %21, %22 : vector<128x24xi32>
    %24 = arith.extui %23 : vector<128x24xi1> to vector<128x24xi32>
    %25 = arith.sitofp %24 : vector<128x24xi32> to vector<128x24xf32>
    %26 = tpu.iota {dimensions = array<i32: 0>} : vector<128x1xi32>
    %27 = vector.broadcast %11 : vector<1x1xi32> to vector<128x1xi32>
    %28 = arith.cmpi slt, %26, %27 : vector<128x1xi32>
    %29 = arith.extui %28 : vector<128x1xi1> to vector<128x1xi32>
    %30 = arith.sitofp %29 : vector<128x1xi32> to vector<128x1xf32>
    %c0_17 = arith.constant 0 : index
    %c0_18 = arith.constant 0 : index
    %31 = vector.load %arg7[%c0_17, %c0_18] : memref<12x32xf32, #tpu.memory_space<vmem>>, vector<12x32xf32>
    %cst = arith.constant dense<0.000000e+00> : vector<128x32xf32>
    %32 = tpu.matmul %1, %31, %cst {dimension_numbers = #tpu.dot_dimension_numbers<[1], [0], [0], [1], [0, 0, 1, 1], [], []>} : vector<128x12xf32>, vector<12x32xf32>, vector<128x32xf32> -> vector<128x32xf32>
    %c0_19 = arith.constant 0 : index
    %c0_20 = arith.constant 0 : index
    %33 = vector.load %arg8[%c0_19, %c0_20] : memref<3x32xf32, #tpu.memory_space<vmem>>, vector<3x32xf32>
    %cst_21 = arith.constant dense<0.000000e+00> : vector<24x32xf32>
    %34 = tpu.matmul %3, %33, %cst_21 {dimension_numbers = #tpu.dot_dimension_numbers<[1], [0], [0], [1], [0, 0, 1, 1], [], []>} : vector<24x3xf32>, vector<3x32xf32>, vector<24x32xf32> -> vector<24x32xf32>
    %c0_22 = arith.constant 0 : index
    %c0_23 = arith.constant 0 : index
    %35 = vector.load %arg10[%c0_22, %c0_23] : memref<1x32xf32, #tpu.memory_space<vmem>>, vector<1x32xf32>
    %36 = vector.broadcast %35 : vector<1x32xf32> to vector<128x32xf32>
    %37 = arith.mulf %32, %36 : vector<128x32xf32>
    %cst_24 = arith.constant dense<0.000000e+00> : vector<128xf32>
    %38 = vector.multi_reduction <add>, %37, %cst_24 [1] : vector<128x32xf32> to vector<128xf32>
    %39 = vector.shape_cast %38 : vector<128xf32> to vector<128x1xf32>
    %c0_25 = arith.constant 0 : index
    %c0_26 = arith.constant 0 : index
    %40 = vector.load %arg11[%c0_25, %c0_26] : memref<1x32xf32, #tpu.memory_space<vmem>>, vector<1x32xf32>
    %41 = vector.broadcast %40 : vector<1x32xf32> to vector<24x32xf32>
    %42 = arith.mulf %34, %41 : vector<24x32xf32>
    %cst_27 = arith.constant dense<0.000000e+00> : vector<24xf32>
    %43 = vector.multi_reduction <add>, %42, %cst_27 [1] : vector<24x32xf32> to vector<24xf32>
    %44 = vector.shape_cast %43 : vector<24xf32> to vector<24x1xf32>
    %cst_28 = arith.constant dense<0.000000e+00> : vector<24x32xf32>
    %45 = tpu.matmul %16, %32, %cst_28 {dimension_numbers = #tpu.dot_dimension_numbers<[1], [0], [0], [1], [0, 0, 1, 1], [], []>} : vector<24x128xf32>, vector<128x32xf32>, vector<24x32xf32> -> vector<24x32xf32>
    %c0_29 = arith.constant 0 : index
    %c0_30 = arith.constant 0 : index
    %46 = vector.load %arg9[%c0_29, %c0_30] : memref<1x32xf32, #tpu.memory_space<vmem>>, vector<1x32xf32>
    %47 = vector.broadcast %46 : vector<1x32xf32> to vector<24x32xf32>
    %48 = arith.mulf %45, %47 : vector<24x32xf32>
    %cst_31 = arith.constant dense<0.000000e+00> : vector<24xf32>
    %49 = vector.multi_reduction <add>, %48, %cst_31 [1] : vector<24x32xf32> to vector<24xf32>
    %50 = vector.shape_cast %49 : vector<24xf32> to vector<24x1xf32>
    %cst_32 = arith.constant dense<0.000000e+00> : vector<24x1xf32>
    %51 = tpu.matmul %20, %39, %cst_32 {dimension_numbers = #tpu.dot_dimension_numbers<[1], [0], [0], [1], [0, 0, 1, 1], [], []>} : vector<24x128xf32>, vector<128x1xf32>, vector<24x1xf32> -> vector<24x1xf32>
    %52 = arith.addf %50, %51 : vector<24x1xf32>
    %53 = arith.addf %52, %44 : vector<24x1xf32>
    %cst_33 = arith.constant 0.000000e+00 : f32
    %54 = vector.broadcast %cst_33 : f32 to vector<24x1xf32>
    %55 = arith.cmpf ogt, %53, %54 : vector<24x1xf32>
    %cst_34 = arith.constant 2.000000e-01 : f32
    %56 = vector.broadcast %cst_34 : f32 to vector<24x1xf32>
    %57 = arith.mulf %56, %53 : vector<24x1xf32>
    %58 = arith.select %55, %53, %57 : vector<24x1xi1>, vector<24x1xf32>
    %cst_35 = arith.constant 1.000000e+00 : f32
    %59 = vector.broadcast %cst_35 : f32 to vector<24x128xf32>
    %60 = arith.subf %20, %59 : vector<24x128xf32>
    %cst_36 = arith.constant 1.000000e+30 : f32
    %61 = vector.broadcast %cst_36 : f32 to vector<24x128xf32>
    %62 = arith.mulf %60, %61 : vector<24x128xf32>
    %63 = vector.broadcast %58 : vector<24x1xf32> to vector<24x128xf32>
    %64 = arith.addf %63, %62 : vector<24x128xf32>
    %cst_37 = arith.constant dense<0xFF800000> : vector<128xf32>
    %65 = vector.multi_reduction <maximumf>, %64, %cst_37 [0] : vector<24x128xf32> to vector<128xf32>
    %66 = vector.shape_cast %65 : vector<128xf32> to vector<1x128xf32>
    %67 = vector.broadcast %66 : vector<1x128xf32> to vector<24x128xf32>
    %68 = arith.mulf %20, %67 : vector<24x128xf32>
    %cst_38 = arith.constant dense<0.000000e+00> : vector<24xf32>
    %69 = vector.multi_reduction <add>, %68, %cst_38 [1] : vector<24x128xf32> to vector<24xf32>
    %70 = vector.shape_cast %69 : vector<24xf32> to vector<24x1xf32>
    %71 = arith.subf %58, %70 : vector<24x1xf32>
    %72 = math.exp %71 : vector<24x1xf32>
    %73 = vector.broadcast %72 : vector<24x1xf32> to vector<24x32xf32>
    %74 = arith.mulf %73, %45 : vector<24x32xf32>
    %cst_39 = arith.constant dense<0.000000e+00> : vector<128x32xf32>
    %75 = tpu.matmul %25, %74, %cst_39 {dimension_numbers = #tpu.dot_dimension_numbers<[1], [0], [0], [1], [0, 0, 1, 1], [], []>} : vector<128x24xf32>, vector<24x32xf32>, vector<128x32xf32> -> vector<128x32xf32>
    %cst_40 = arith.constant dense<0.000000e+00> : vector<128x1xf32>
    %76 = tpu.matmul %25, %72, %cst_40 {dimension_numbers = #tpu.dot_dimension_numbers<[1], [0], [0], [1], [0, 0, 1, 1], [], []>} : vector<128x24xf32>, vector<24x1xf32>, vector<128x1xf32> -> vector<128x1xf32>
    %cst_41 = arith.constant 1.000000e-30 : f32
    %77 = vector.broadcast %cst_41 : f32 to vector<128x1xf32>
    %78 = arith.maximumf %76, %77 : vector<128x1xf32>
    %79 = vector.broadcast %78 : vector<128x1xf32> to vector<128x32xf32>
    %80 = arith.divf %75, %79 : vector<128x32xf32>
    %c0_42 = arith.constant 0 : index
    %c0_43 = arith.constant 0 : index
    %81 = vector.load %arg12[%c0_42, %c0_43] : memref<1x32xf32, #tpu.memory_space<vmem>>, vector<1x32xf32>
    %82 = vector.broadcast %81 : vector<1x32xf32> to vector<128x32xf32>
    %83 = arith.addf %80, %82 : vector<128x32xf32>
    %cst_44 = arith.constant 0.000000e+00 : f32
    %84 = vector.broadcast %cst_44 : f32 to vector<128x32xf32>
    %85 = arith.maximumf %83, %84 : vector<128x32xf32>
    %c0_45 = arith.constant 0 : index
    %c0_46 = arith.constant 0 : index
    %86 = vector.load %arg13[%c0_45, %c0_46] : memref<1x32xf32, #tpu.memory_space<vmem>>, vector<1x32xf32>
    %87 = vector.broadcast %86 : vector<1x32xf32> to vector<128x32xf32>
    %88 = arith.mulf %85, %87 : vector<128x32xf32>
    %cst_47 = arith.constant dense<0.000000e+00> : vector<128xf32>
    %89 = vector.multi_reduction <add>, %88, %cst_47 [1] : vector<128x32xf32> to vector<128xf32>
    %90 = vector.shape_cast %89 : vector<128xf32> to vector<128x1xf32>
    %c0_48 = arith.constant 0 : index
    %c0_49 = arith.constant 0 : index
    %91 = vector.load %arg14[%c0_48, %c0_49] : memref<1x1xf32, #tpu.memory_space<vmem>>, vector<1x1xf32>
    %92 = vector.broadcast %91 : vector<1x1xf32> to vector<128x1xf32>
    %93 = arith.addf %90, %92 : vector<128x1xf32>
    %cst_50 = arith.constant 1.000000e+00 : f32
    %94 = vector.broadcast %cst_50 : f32 to vector<128x1xf32>
    %95 = arith.subf %30, %94 : vector<128x1xf32>
    %cst_51 = arith.constant 1.000000e+30 : f32
    %96 = vector.broadcast %cst_51 : f32 to vector<128x1xf32>
    %97 = arith.mulf %95, %96 : vector<128x1xf32>
    %98 = arith.addf %93, %97 : vector<128x1xf32>
    %cst_52 = arith.constant dense<0xFF800000> : vector<1xf32>
    %99 = vector.multi_reduction <maximumf>, %98, %cst_52 [0] : vector<128x1xf32> to vector<1xf32>
    %100 = vector.shape_cast %99 : vector<1xf32> to vector<1x1xf32>
    %101 = vector.broadcast %100 : vector<1x1xf32> to vector<128x1xf32>
    %102 = arith.subf %93, %101 : vector<128x1xf32>
    %cst_53 = arith.constant 0.000000e+00 : f32
    %103 = vector.broadcast %cst_53 : f32 to vector<128x1xf32>
    %104 = arith.minimumf %102, %103 : vector<128x1xf32>
    %105 = math.exp %104 : vector<128x1xf32>
    %106 = arith.mulf %30, %105 : vector<128x1xf32>
    %cst_54 = arith.constant dense<0.000000e+00> : vector<1xf32>
    %107 = vector.multi_reduction <add>, %106, %cst_54 [0] : vector<128x1xf32> to vector<1xf32>
    %108 = vector.shape_cast %107 : vector<1xf32> to vector<1x1xf32>
    %cst_55 = arith.constant 1.000000e-30 : f32
    %109 = vector.broadcast %cst_55 : f32 to vector<1x1xf32>
    %110 = arith.maximumf %108, %109 : vector<1x1xf32>
    %111 = vector.broadcast %110 : vector<1x1xf32> to vector<128x1xf32>
    %112 = arith.divf %106, %111 : vector<128x1xf32>
    %113 = vector.broadcast %112 : vector<128x1xf32> to vector<128x32xf32>
    %114 = arith.mulf %113, %85 : vector<128x32xf32>
    %cst_56 = arith.constant dense<0.000000e+00> : vector<32xf32>
    %115 = vector.multi_reduction <add>, %114, %cst_56 [0] : vector<128x32xf32> to vector<32xf32>
    %116 = vector.shape_cast %115 : vector<32xf32> to vector<1x32xf32>
    %c0_57 = arith.constant 0 : index
    %c0_58 = arith.constant 0 : index
    %117 = vector.load %arg15[%c0_57, %c0_58] : memref<1x32xf32, #tpu.memory_space<vmem>>, vector<1x32xf32>
    %118 = arith.mulf %116, %117 : vector<1x32xf32>
    %cst_59 = arith.constant dense<0.000000e+00> : vector<1xf32>
    %119 = vector.multi_reduction <add>, %118, %cst_59 [1] : vector<1x32xf32> to vector<1xf32>
    %120 = vector.shape_cast %119 : vector<1xf32> to vector<1x1xf32>
    %c0_60 = arith.constant 0 : index
    %c0_61 = arith.constant 0 : index
    %121 = vector.load %arg16[%c0_60, %c0_61] : memref<1x1xf32, #tpu.memory_space<vmem>>, vector<1x1xf32>
    %122 = arith.addf %120, %121 : vector<1x1xf32>
    %cst_62 = arith.constant 0.000000e+00 : f32
    %123 = vector.broadcast %cst_62 : f32 to vector<1x1xf32>
    %124 = arith.subf %123, %122 : vector<1x1xf32>
    %125 = math.exp %124 : vector<1x1xf32>
    %cst_63 = arith.constant 1.000000e+00 : f32
    %126 = vector.broadcast %cst_63 : f32 to vector<1x1xf32>
    %127 = arith.addf %126, %125 : vector<1x1xf32>
    %cst_64 = arith.constant 1.000000e+00 : f32
    %128 = vector.broadcast %cst_64 : f32 to vector<1x1xf32>
    %129 = arith.divf %128, %127 : vector<1x1xf32>
    %130 = vector.shape_cast %129 : vector<1x1xf32> to vector<1x1xf32>
    %131 = vector.broadcast %130 : vector<1x1xf32> to vector<8x128xf32>
    %c0_65 = arith.constant 0 : index
    %c0_66 = arith.constant 0 : index
    %c0_67 = arith.constant 0 : index
    %132 = vector.load %arg17[%c0_65, %c0_66, %c0_67] : memref<1x8x128xf32, #tpu.memory_space<vmem>>, vector<1x8x128xf32>
    %133 = vector.shape_cast %132 : vector<1x8x128xf32> to vector<8x128xf32>
    %134 = vector.shape_cast %131 : vector<8x128xf32> to vector<1x8x128xf32>
    tpu.vector_store %arg17[%c0_65, %c0_66, %c0_67], %134 {strides = array<i32>} : memref<1x8x128xf32, #tpu.memory_space<vmem>>, vector<1x8x128xf32>,
    return
  }
  func.func @transform_0(%arg0: i32) -> (i32, i32, i32) {
    %c0_i32 = arith.constant 0 : i32
    %c0_i32_0 = arith.constant 0 : i32
    %c0_i32_1 = arith.constant 0 : i32
    return %arg0, %c0_i32, %c0_i32_0 : i32, i32, i32
  }
  func.func @transform_1(%arg0: i32) -> (i32, i32, i32) {
    %c0_i32 = arith.constant 0 : i32
    %c0_i32_0 = arith.constant 0 : i32
    %c0_i32_1 = arith.constant 0 : i32
    return %arg0, %c0_i32, %c0_i32_0 : i32, i32, i32
  }
  func.func @transform_2(%arg0: i32) -> (i32, i32, i32) {
    %c0_i32 = arith.constant 0 : i32
    %c0_i32_0 = arith.constant 0 : i32
    %c0_i32_1 = arith.constant 0 : i32
    return %arg0, %c0_i32, %c0_i32_0 : i32, i32, i32
  }
  func.func @transform_3(%arg0: i32) -> (i32, i32, i32) {
    %c0_i32 = arith.constant 0 : i32
    %c0_i32_0 = arith.constant 0 : i32
    %c0_i32_1 = arith.constant 0 : i32
    return %arg0, %c0_i32, %c0_i32_0 : i32, i32, i32
  }
  func.func @transform_4(%arg0: i32) -> (i32, i32, i32) {
    %c0_i32 = arith.constant 0 : i32
    %c0_i32_0 = arith.constant 0 : i32
    %c0_i32_1 = arith.constant 0 : i32
    return %arg0, %c0_i32, %c0_i32_0 : i32, i32, i32
  }
  func.func @transform_5(%arg0: i32) -> (i32, i32, i32) {
    %c0_i32 = arith.constant 0 : i32
    %c0_i32_0 = arith.constant 0 : i32
    %c0_i32_1 = arith.constant 0 : i32
    return %arg0, %c0_i32, %c0_i32_0 : i32, i32, i32
  }
  func.func @transform_6(%arg0: i32) -> (i32, i32) {
    %c0_i32 = arith.constant 0 : i32
    %c0_i32_0 = arith.constant 0 : i32
    %c0_i32_1 = arith.constant 0 : i32
    return %c0_i32, %c0_i32_0 : i32, i32
  }
  func.func @transform_7(%arg0: i32) -> (i32, i32) {
    %c0_i32 = arith.constant 0 : i32
    %c0_i32_0 = arith.constant 0 : i32
    %c0_i32_1 = arith.constant 0 : i32
    return %c0_i32, %c0_i32_0 : i32, i32
  }
  func.func @transform_8(%arg0: i32) -> (i32, i32) {
    %c0_i32 = arith.constant 0 : i32
    %c0_i32_0 = arith.constant 0 : i32
    %c0_i32_1 = arith.constant 0 : i32
    return %c0_i32, %c0_i32_0 : i32, i32
  }
  func.func @transform_9(%arg0: i32) -> (i32, i32) {
    %c0_i32 = arith.constant 0 : i32
    %c0_i32_0 = arith.constant 0 : i32
    %c0_i32_1 = arith.constant 0 : i32
    return %c0_i32, %c0_i32_0 : i32, i32
  }
  func.func @transform_10(%arg0: i32) -> (i32, i32) {
    %c0_i32 = arith.constant 0 : i32
    %c0_i32_0 = arith.constant 0 : i32
    %c0_i32_1 = arith.constant 0 : i32
    return %c0_i32, %c0_i32_0 : i32, i32
  }
  func.func @transform_11(%arg0: i32) -> (i32, i32) {
    %c0_i32 = arith.constant 0 : i32
    %c0_i32_0 = arith.constant 0 : i32
    %c0_i32_1 = arith.constant 0 : i32
    return %c0_i32, %c0_i32_0 : i32, i32
  }
  func.func @transform_12(%arg0: i32) -> (i32, i32) {
    %c0_i32 = arith.constant 0 : i32
    %c0_i32_0 = arith.constant 0 : i32
    %c0_i32_1 = arith.constant 0 : i32
    return %c0_i32, %c0_i32_0 : i32, i32
  }
  func.func @transform_13(%arg0: i32) -> (i32, i32) {
    %c0_i32 = arith.constant 0 : i32
    %c0_i32_0 = arith.constant 0 : i32
    %c0_i32_1 = arith.constant 0 : i32
    return %c0_i32, %c0_i32_0 : i32, i32
  }
  func.func @transform_14(%arg0: i32) -> (i32, i32) {
    %c0_i32 = arith.constant 0 : i32
    %c0_i32_0 = arith.constant 0 : i32
    %c0_i32_1 = arith.constant 0 : i32
    return %c0_i32, %c0_i32_0 : i32, i32
  }
  func.func @transform_15(%arg0: i32) -> (i32, i32) {
    %c0_i32 = arith.constant 0 : i32
    %c0_i32_0 = arith.constant 0 : i32
    %c0_i32_1 = arith.constant 0 : i32
    return %c0_i32, %c0_i32_0 : i32, i32
  }
  func.func @transform_16(%arg0: i32) -> (i32, i32, i32) {
    %c0_i32 = arith.constant 0 : i32
    %c0_i32_0 = arith.constant 0 : i32
    %c0_i32_1 = arith.constant 0 : i32
    return %arg0, %c0_i32, %c0_i32_0 : i32, i32, i32
  }
}

</mosaic_0001>

<llo_original>
// kernel: tpu_custom_call.1
$region0: #{tpu_custom_call.1}
  #allocation0 [shape = 'u32[]', space=smem, size = 0x4, offset = 0x4, fixed_abs, tag = 'smem constant byte address 0x4 - core index']
  #allocation1 [shape = 'u32[144,128]{1,0:T(1,128)}', space=vmem, size = 0x12000, scoped, tag = 'internal scratch']
  #allocation2 [shape = 'f32[1,1]{1,0:T(1,128)S(1)}', space=vmem, size = 0x200, scoped, tag = 'scoped memory for tpu_custom_call.1']
  #allocation3 [shape = 'f32[1,1]{1,0:T(1,128)S(1)}', space=vmem, size = 0x200, scoped, tag = 'scoped memory for tpu_custom_call.1']
  %s0 = inlined_call_operand.vmem [shape: f32[2,128,12], index: 0, kind: input, shape index: {}]
  %s1 = inlined_call_operand.vmem [shape: f32[2,24,3], index: 1, kind: input, shape index: {}]
  %s2 = inlined_call_operand.vmem [shape: s32[2,24,1], index: 2, kind: input, shape index: {}]
  %s3 = inlined_call_operand.vmem [shape: s32[2,24,1], index: 3, kind: input, shape index: {}]
  %s4 = inlined_call_operand.vmem [shape: s32[2,1,24], index: 4, kind: input, shape index: {}]
  %s5 = inlined_call_operand.vmem [shape: s32[2,1,1], index: 5, kind: input, shape index: {}]
  %s6 = inlined_call_operand.vmem [shape: f32[12,32], index: 6, kind: input, shape index: {}]
  %s7 = inlined_call_operand.vmem [shape: f32[3,32], index: 7, kind: input, shape index: {}]
  %s8 = inlined_call_operand.vmem [shape: f32[1,32], index: 8, kind: input, shape index: {}]
  %s9 = inlined_call_operand.vmem [shape: f32[1,32], index: 9, kind: input, shape index: {}]
  %s10 = inlined_call_operand.vmem [shape: f32[1,32], index: 10, kind: input, shape index: {}]
  %s11 = inlined_call_operand.vmem [shape: f32[1,32], index: 11, kind: input, shape index: {}]
  %s12 = inlined_call_operand.vmem [shape: f32[1,32], index: 12, kind: input, shape index: {}]
  %s13 = inlined_call_operand.<no memory space> [shape: f32[1,1], index: 13, kind: input, shape index: {}]
  %s14 = inlined_call_operand.vmem [shape: f32[1,32], index: 14, kind: input, shape index: {}]
  %s15 = inlined_call_operand.<no memory space> [shape: f32[1,1], index: 15, kind: input, shape index: {}]
  %s16 = inlined_call_operand.hbm [shape: f32[2,8,128], index: 16, kind: output, shape index: {}]
  %s17 = sld [smem:[#allocation0]]
  $region97: #{tpu_custom_call.1} parent=0
    _
  %s19 = ssub.s32 1, %s17
  %s20 = scalar_select 0, %s19, %s17
  %v21 = vstv %s13
  %22 = vst [vmem:[#allocation2] sm:$0x1] %v21
  %v23 = vstv %s15
  %24 = vst [vmem:[#allocation3] sm:$0x1] %v23
  $region1: #{tpu_custom_call.1} parent=0
    #allocation4 [shape = 'u8[8192]{0}', space=vmem, size = 0x2000, scoped, tag = 'output window, operand 0']
    #allocation5 [shape = 's32[2]{0}', space=sflag, size = 0x8, scoped, tag = 'scoped memory for tpu_custom_call.1']
    %25 = vsyncpa [#allocation5], 0
    %s26 = scalar_lea.sflag [#allocation5], 1
    %27 = vsyncpa %s26, 0
    loop: start=0, step=1, limit=4
    $region2: #{tpu_custom_call.1} parent=1 // loop_pre_header
      _
    $region3: #{tpu_custom_call.1} parent=1 // loop_header
      %s29 = sphi 0, %s33
      %p30 = scmp.ge.s32.totalorder %s29, 4
      %s39 = sphi 0, %s41
      %s42 = sphi 0, %s39
      %s43 = sphi 0, %s42
      %s59 = sphi 0, %s43
      %s65 = sphi 0, %s67
      %s68 = sphi 0, %s65
      %s69 = sphi 0, %s68
      %s85 = sphi 0, %s69
      %s91 = sphi 0, %s93
      %s94 = sphi 0, %s91
      %s95 = sphi 0, %s94
      %s111 = sphi 0, %s95
      %s117 = sphi 0, %s119
      %s120 = sphi 0, %s117
      %s121 = sphi 0, %s120
      %s137 = sphi 0, %s121
      %s143 = sphi 0, %s145
      %s146 = sphi 0, %s143
      %s147 = sphi 0, %s146
      %s163 = sphi 0, %s147
      %s169 = sphi 0, %s171
      %s172 = sphi 0, %s169
      %s173 = sphi 0, %s172
      %s189 = sphi 0, %s173
      %s193 = sphi 0, %s193
      %s195 = sphi 0, %s193
      %s196 = sphi 0, %s195
      %s210 = sphi 0, %s196
      %s214 = sphi 0, %s214
      %s216 = sphi 0, %s214
      %s217 = sphi 0, %s216
      %s231 = sphi 0, %s217
      %s235 = sphi 0, %s235
      %s237 = sphi 0, %s235
      %s238 = sphi 0, %s237
      %s252 = sphi 0, %s238
      %s256 = sphi 0, %s256
      %s258 = sphi 0, %s256
      %s259 = sphi 0, %s258
      %s273 = sphi 0, %s259
      %s277 = sphi 0, %s277
      %s279 = sphi 0, %s277
      %s280 = sphi 0, %s279
      %s294 = sphi 0, %s280
      %s298 = sphi 0, %s298
      %s300 = sphi 0, %s298
      %s301 = sphi 0, %s300
      %s315 = sphi 0, %s301
      %s319 = sphi 0, %s319
      %s321 = sphi 0, %s319
      %s322 = sphi 0, %s321
      %s336 = sphi 0, %s322
      %s340 = sphi 0, %s340
      %s342 = sphi 0, %s340
      %s343 = sphi 0, %s342
      %s357 = sphi 0, %s343
      %s361 = sphi 0, %s361
      %s363 = sphi 0, %s361
      %s364 = sphi 0, %s363
      %s378 = sphi 0, %s364
      %s382 = sphi 0, %s382
      %s384 = sphi 0, %s382
      %s385 = sphi 0, %s384
      %s399 = sphi 0, %s385
      %s405 = sphi 0, %s407
      %s408 = sphi 0, %s405
      %s409 = sphi 0, %s408
      %s425 = sphi 0, %s409
    $region4: #{tpu_custom_call.1} parent=1 // loop_header_branch
      %32 = sbr.rel (%p30) target = $region8
    $region5: #{tpu_custom_call.1} parent=1 // loop_body
      %s34 = ssub.s32 %s29, 1
      %s35 = ssub.s32 %s29, 2
      %s36 = sadd.s32 %s29, 1
      %s37 = ssub.s32 %s29, %s36
      %p38 = scmp.eq.s32.totalorder %s37, 0
      %s40 = sadd.s32 %s39, 1
      %s41 = scalar_select %p38, %s39, %s40
      %p44 = pneg %p38
      %p45 = scmp.eq.s32.totalorder %s29, 1
      %p46 = por %p44, %p45
      %p47 = scmp.ne.s32.totalorder %s39, %s42
      %p48 = scmp.eq.s32.totalorder %s29, 0
      %p49 = por %p47, %p48
      %p50 = scmp.ne.s32.totalorder %s39, %s42
      %p51 = scmp.eq.s32.totalorder %s34, 1
      %p52 = por %p50, %p51
      %p53 = scmp.ne.s32.totalorder %s42, %s43
      %p54 = scmp.eq.s32.totalorder %s34, 0
      %p55 = por %p53, %p54
      %p56 = scmp.ne.s32.totalorder %s42, %s43
      %p57 = scmp.eq.s32.totalorder %s35, 1
      %p58 = por %p56, %p57
      %p60 = scmp.ne.s32.totalorder %s43, %s59
      %p61 = scmp.eq.s32.totalorder %s35, 0
      %p62 = por %p60, %p61
      %s63 = ssub.s32 %s29, %s36
      %p64 = scmp.eq.s32.totalorder %s63, 0
      %s66 = sadd.s32 %s65, 1
      %s67 = scalar_select %p64, %s65, %s66
      %p70 = pneg %p64
      %p71 = scmp.eq.s32.totalorder %s29, 1
      %p72 = por %p70, %p71
      %p73 = scmp.ne.s32.totalorder %s65, %s68
      %p74 = scmp.eq.s32.totalorder %s29, 0
      %p75 = por %p73, %p74
      %p76 = scmp.ne.s32.totalorder %s65, %s68
      %p77 = scmp.eq.s32.totalorder %s34, 1
      %p78 = por %p76, %p77
      %p79 = scmp.ne.s32.totalorder %s68, %s69
      %p80 = scmp.eq.s32.totalorder %s34, 0
      %p81 = por %p79, %p80
      %p82 = scmp.ne.s32.totalorder %s68, %s69
      %p83 = scmp.eq.s32.totalorder %s35, 1
      %p84 = por %p82, %p83
      %p86 = scmp.ne.s32.totalorder %s69, %s85
      %p87 = scmp.eq.s32.totalorder %s35, 0
      %p88 = por %p86, %p87
      %s89 = ssub.s32 %s29, %s36
      %p90 = scmp.eq.s32.totalorder %s89, 0
      %s92 = sadd.s32 %s91, 1
      %s93 = scalar_select %p90, %s91, %s92
      %p96 = pneg %p90
      %p97 = scmp.eq.s32.totalorder %s29, 1
      %p98 = por %p96, %p97
      %p99 = scmp.ne.s32.totalorder %s91, %s94
      %p100 = scmp.eq.s32.totalorder %s29, 0
      %p101 = por %p99, %p100
      %p102 = scmp.ne.s32.totalorder %s91, %s94
      %p103 = scmp.eq.s32.totalorder %s34, 1
      %p104 = por %p102, %p103
      %p105 = scmp.ne.s32.totalorder %s94, %s95
      %p106 = scmp.eq.s32.totalorder %s34, 0
      %p107 = por %p105, %p106
      %p108 = scmp.ne.s32.totalorder %s94, %s95
      %p109 = scmp.eq.s32.totalorder %s35, 1
      %p110 = por %p108, %p109
      %p112 = scmp.ne.s32.totalorder %s95, %s111
      %p113 = scmp.eq.s32.totalorder %s35, 0
      %p114 = por %p112, %p113
      %s115 = ssub.s32 %s29, %s36
      %p116 = scmp.eq.s32.totalorder %s115, 0
      %s118 = sadd.s32 %s117, 1
      %s119 = scalar_select %p116, %s117, %s118
      %p122 = pneg %p116
      %p123 = scmp.eq.s32.totalorder %s29, 1
      %p124 = por %p122, %p123
      %p125 = scmp.ne.s32.totalorder %s117, %s120
      %p126 = scmp.eq.s32.totalorder %s29, 0
      %p127 = por %p125, %p126
      %p128 = scmp.ne.s32.totalorder %s117, %s120
      %p129 = scmp.eq.s32.totalorder %s34, 1
      %p130 = por %p128, %p129
      %p131 = scmp.ne.s32.totalorder %s120, %s121
      %p132 = scmp.eq.s32.totalorder %s34, 0
      %p133 = por %p131, %p132
      %p134 = scmp.ne.s32.totalorder %s120, %s121
      %p135 = scmp.eq.s32.totalorder %s35, 1
      %p136 = por %p134, %p135
      %p138 = scmp.ne.s32.totalorder %s121, %s137
      %p139 = scmp.eq.s32.totalorder %s35, 0
      %p140 = por %p138, %p139
      %s141 = ssub.s32 %s29, %s36
      %p142 = scmp.eq.s32.totalorder %s141, 0
      %s144 = sadd.s32 %s143, 1
      %s145 = scalar_select %p142, %s143, %s144
      %p148 = pneg %p142
      %p149 = scmp.eq.s32.totalorder %s29, 1
      %p150 = por %p148, %p149
      %p151 = scmp.ne.s32.totalorder %s143, %s146
      %p152 = scmp.eq.s32.totalorder %s29, 0
      %p153 = por %p151, %p152
      %p154 = scmp.ne.s32.totalorder %s143, %s146
      %p155 = scmp.eq.s32.totalorder %s34, 1
      %p156 = por %p154, %p155
      %p157 = scmp.ne.s32.totalorder %s146, %s147
      %p158 = scmp.eq.s32.totalorder %s34, 0
      %p159 = por %p157, %p158
      %p160 = scmp.ne.s32.totalorder %s146, %s147
      %p161 = scmp.eq.s32.totalorder %s35, 1
      %p162 = por %p160, %p161
      %p164 = scmp.ne.s32.totalorder %s147, %s163
      %p165 = scmp.eq.s32.totalorder %s35, 0
      %p166 = por %p164, %p165
      %s167 = ssub.s32 %s29, %s36
      %p168 = scmp.eq.s32.totalorder %s167, 0
      %s170 = sadd.s32 %s169, 1
      %s171 = scalar_select %p168, %s169, %s170
      %p174 = pneg %p168
      %p175 = scmp.eq.s32.totalorder %s29, 1
      %p176 = por %p174, %p175
      %p177 = scmp.ne.s32.totalorder %s169, %s172
      %p178 = scmp.eq.s32.totalorder %s29, 0
      %p179 = por %p177, %p178
      %p180 = scmp.ne.s32.totalorder %s169, %s172
      %p181 = scmp.eq.s32.totalorder %s34, 1
      %p182 = por %p180, %p181
      %p183 = scmp.ne.s32.totalorder %s172, %s173
      %p184 = scmp.eq.s32.totalorder %s34, 0
      %p185 = por %p183, %p184
      %p186 = scmp.ne.s32.totalorder %s172, %s173
      %p187 = scmp.eq.s32.totalorder %s35, 1
      %p188 = por %p186, %p187
      %p190 = scmp.ne.s32.totalorder %s173, %s189
      %p191 = scmp.eq.s32.totalorder %s35, 0
      %p192 = por %p190, %p191
      %s194 = sadd.s32 %s193, 1
      %p197 = scmp.eq.s32.totalorder %s29, 1
      %p198 = scmp.ne.s32.totalorder %s193, %s195
      %p199 = scmp.eq.s32.totalorder %s29, 0
      %p200 = por %p198, %p199
      %p201 = scmp.ne.s32.totalorder %s193, %s195
      %p202 = scmp.eq.s32.totalorder %s34, 1
      %p203 = por %p201, %p202
      %p204 = scmp.ne.s32.totalorder %s195, %s196
      %p205 = scmp.eq.s32.totalorder %s34, 0
      %p206 = por %p204, %p205
      %p207 = scmp.ne.s32.totalorder %s195, %s196
      %p208 = scmp.eq.s32.totalorder %s35, 1
      %p209 = por %p207, %p208
      %p211 = scmp.ne.s32.totalorder %s196, %s210
      %p212 = scmp.eq.s32.totalorder %s35, 0
      %p213 = por %p211, %p212
      %s215 = sadd.s32 %s214, 1
      %p218 = scmp.eq.s32.totalorder %s29, 1
      %p219 = scmp.ne.s32.totalorder %s214, %s216
      %p220 = scmp.eq.s32.totalorder %s29, 0
      %p221 = por %p219, %p220
      %p222 = scmp.ne.s32.totalorder %s214, %s216
      %p223 = scmp.eq.s32.totalorder %s34, 1
      %p224 = por %p222, %p223
      %p225 = scmp.ne.s32.totalorder %s216, %s217
      %p226 = scmp.eq.s32.totalorder %s34, 0
      %p227 = por %p225, %p226
      %p228 = scmp.ne.s32.totalorder %s216, %s217
      %p229 = scmp.eq.s32.totalorder %s35, 1
      %p230 = por %p228, %p229
      %p232 = scmp.ne.s32.totalorder %s217, %s231
      %p233 = scmp.eq.s32.totalorder %s35, 0
      %p234 = por %p232, %p233
      %s236 = sadd.s32 %s235, 1
      %p239 = scmp.eq.s32.totalorder %s29, 1
      %p240 = scmp.ne.s32.totalorder %s235, %s237
      %p241 = scmp.eq.s32.totalorder %s29, 0
      %p242 = por %p240, %p241
      %p243 = scmp.ne.s32.totalorder %s235, %s237
      %p244 = scmp.eq.s32.totalorder %s34, 1
      %p245 = por %p243, %p244
      %p246 = scmp.ne.s32.totalorder %s237, %s238
      %p247 = scmp.eq.s32.totalorder %s34, 0
      %p248 = por %p246, %p247
      %p249 = scmp.ne.s32.totalorder %s237, %s238
      %p250 = scmp.eq.s32.totalorder %s35, 1
      %p251 = por %p249, %p250
      %p253 = scmp.ne.s32.totalorder %s238, %s252
      %p254 = scmp.eq.s32.totalorder %s35, 0
      %p255 = por %p253, %p254
      %s257 = sadd.s32 %s256, 1
      %p260 = scmp.eq.s32.totalorder %s29, 1
      %p261 = scmp.ne.s32.totalorder %s256, %s258
      %p262 = scmp.eq.s32.totalorder %s29, 0
      %p263 = por %p261, %p262
      %p264 = scmp.ne.s32.totalorder %s256, %s258
      %p265 = scmp.eq.s32.totalorder %s34, 1
      %p266 = por %p264, %p265
      %p267 = scmp.ne.s32.totalorder %s258, %s259
      %p268 = scmp.eq.s32.totalorder %s34, 0
      %p269 = por %p267, %p268
      %p270 = scmp.ne.s32.totalorder %s258, %s259
      %p271 = scmp.eq.s32.totalorder %s35, 1
      %p272 = por %p270, %p271
      %p274 = scmp.ne.s32.totalorder %s259, %s273
      %p275 = scmp.eq.s32.totalorder %s35, 0
      %p276 = por %p274, %p275
      %s278 = sadd.s32 %s277, 1
      %p281 = scmp.eq.s32.totalorder %s29, 1
      %p282 = scmp.ne.s32.totalorder %s277, %s279
      %p283 = scmp.eq.s32.totalorder %s29, 0
      %p284 = por %p282, %p283
      %p285 = scmp.ne.s32.totalorder %s277, %s279
      %p286 = scmp.eq.s32.totalorder %s34, 1
      %p287 = por %p285, %p286
      %p288 = scmp.ne.s32.totalorder %s279, %s280
      %p289 = scmp.eq.s32.totalorder %s34, 0
      %p290 = por %p288, %p289
      %p291 = scmp.ne.s32.totalorder %s279, %s280
      %p292 = scmp.eq.s32.totalorder %s35, 1
      %p293 = por %p291, %p292
      %p295 = scmp.ne.s32.totalorder %s280, %s294
      %p296 = scmp.eq.s32.totalorder %s35, 0
      %p297 = por %p295, %p296
      %s299 = sadd.s32 %s298, 1
      %p302 = scmp.eq.s32.totalorder %s29, 1
      %p303 = scmp.ne.s32.totalorder %s298, %s300
      %p304 = scmp.eq.s32.totalorder %s29, 0
      %p305 = por %p303, %p304
      %p306 = scmp.ne.s32.totalorder %s298, %s300
      %p307 = scmp.eq.s32.totalorder %s34, 1
      %p308 = por %p306, %p307
      %p309 = scmp.ne.s32.totalorder %s300, %s301
      %p310 = scmp.eq.s32.totalorder %s34, 0
      %p311 = por %p309, %p310
      %p312 = scmp.ne.s32.totalorder %s300, %s301
      %p313 = scmp.eq.s32.totalorder %s35, 1
      %p314 = por %p312, %p313
      %p316 = scmp.ne.s32.totalorder %s301, %s315
      %p317 = scmp.eq.s32.totalorder %s35, 0
      %p318 = por %p316, %p317
      %s320 = sadd.s32 %s319, 1
      %p323 = scmp.eq.s32.totalorder %s29, 1
      %p324 = scmp.ne.s32.totalorder %s319, %s321
      %p325 = scmp.eq.s32.totalorder %s29, 0
      %p326 = por %p324, %p325
      %p327 = scmp.ne.s32.totalorder %s319, %s321
      %p328 = scmp.eq.s32.totalorder %s34, 1
      %p329 = por %p327, %p328
      %p330 = scmp.ne.s32.totalorder %s321, %s322
      %p331 = scmp.eq.s32.totalorder %s34, 0
      %p332 = por %p330, %p331
      %p333 = scmp.ne.s32.totalorder %s321, %s322
      %p334 = scmp.eq.s32.totalorder %s35, 1
      %p335 = por %p333, %p334
      %p337 = scmp.ne.s32.totalorder %s322, %s336
      %p338 = scmp.eq.s32.totalorder %s35, 0
      %p339 = por %p337, %p338
      %s341 = sadd.s32 %s340, 1
      %p344 = scmp.eq.s32.totalorder %s29, 1
      %p345 = scmp.ne.s32.totalorder %s340, %s342
      %p346 = scmp.eq.s32.totalorder %s29, 0
      %p347 = por %p345, %p346
      %p348 = scmp.ne.s32.totalorder %s340, %s342
      %p349 = scmp.eq.s32.totalorder %s34, 1
      %p350 = por %p348, %p349
      %p351 = scmp.ne.s32.totalorder %s342, %s343
      %p352 = scmp.eq.s32.totalorder %s34, 0
      %p353 = por %p351, %p352
      %p354 = scmp.ne.s32.totalorder %s342, %s343
      %p355 = scmp.eq.s32.totalorder %s35, 1
      %p356 = por %p354, %p355
      %p358 = scmp.ne.s32.totalorder %s343, %s357
      %p359 = scmp.eq.s32.totalorder %s35, 0
      %p360 = por %p358, %p359
      %s362 = sadd.s32 %s361, 1
      %p365 = scmp.eq.s32.totalorder %s29, 1
      %p366 = scmp.ne.s32.totalorder %s361, %s363
      %p367 = scmp.eq.s32.totalorder %s29, 0
      %p368 = por %p366, %p367
      %p369 = scmp.ne.s32.totalorder %s361, %s363
      %p370 = scmp.eq.s32.totalorder %s34, 1
      %p371 = por %p369, %p370
      %p372 = scmp.ne.s32.totalorder %s363, %s364
      %p373 = scmp.eq.s32.totalorder %s34, 0
      %p374 = por %p372, %p373
      %p375 = scmp.ne.s32.totalorder %s363, %s364
      %p376 = scmp.eq.s32.totalorder %s35, 1
      %p377 = por %p375, %p376
      %p379 = scmp.ne.s32.totalorder %s364, %s378
      %p380 = scmp.eq.s32.totalorder %s35, 0
      %p381 = por %p379, %p380
      %s383 = sadd.s32 %s382, 1
      %p386 = scmp.eq.s32.totalorder %s29, 1
      %p387 = scmp.ne.s32.totalorder %s382, %s384
      %p388 = scmp.eq.s32.totalorder %s29, 0
      %p389 = por %p387, %p388
      %p390 = scmp.ne.s32.totalorder %s382, %s384
      %p391 = scmp.eq.s32.totalorder %s34, 1
      %p392 = por %p390, %p391
      %p393 = scmp.ne.s32.totalorder %s384, %s385
      %p394 = scmp.eq.s32.totalorder %s34, 0
      %p395 = por %p393, %p394
      %p396 = scmp.ne.s32.totalorder %s384, %s385
      %p397 = scmp.eq.s32.totalorder %s35, 1
      %p398 = por %p396, %p397
      %p400 = scmp.ne.s32.totalorder %s385, %s399
      %p401 = scmp.eq.s32.totalorder %s35, 0
      %p402 = por %p400, %p401
      %s403 = ssub.s32 %s29, %s36
      %p404 = scmp.eq.s32.totalorder %s403, 0
      %s406 = sadd.s32 %s405, 1
      %s407 = scalar_select %p404, %s405, %s406
      %p410 = pneg %p404
      %p411 = scmp.eq.s32.totalorder %s29, 1
      %p412 = por %p410, %p411
      %p413 = scmp.ne.s32.totalorder %s405, %s408
      %p414 = scmp.eq.s32.totalorder %s29, 0
      %p415 = por %p413, %p414
      %p416 = scmp.ne.s32.totalorder %s405, %s408
      %p417 = scmp.eq.s32.totalorder %s34, 1
      %p418 = por %p416, %p417
      %p419 = scmp.ne.s32.totalorder %s408, %s409
      %p420 = scmp.eq.s32.totalorder %s34, 0
      %p421 = por %p419, %p420
      %p422 = scmp.ne.s32.totalorder %s408, %s409
      %p423 = scmp.eq.s32.totalorder %s35, 1
      %p424 = por %p422, %p423
      %p426 = scmp.ne.s32.totalorder %s409, %s425
      %p427 = scmp.eq.s32.totalorder %s35, 0
      %p428 = por %p426, %p427
      %p429 = scmp.le.s32.totalorder 1, %s29
      %p430 = scmp.lt.s32.totalorder %s29, 3
      %p431 = pnand %p429, %p430
      %p432 = pneg %p431
      // Predicated region
      $region9: #{tpu_custom_call.1} parent=5 // pred_check
        _
      $region10: #{tpu_custom_call.1} parent=5 // pred_check_branch
        %434 = sbr.rel (%p431) target = $region12
      $region11: #{tpu_custom_call.1} parent=5 // pred_region
        %s435 = ssub.s32 %s29, 1
        // Predicated region
        $region13: #{tpu_custom_call.1} parent=11 // pred_check
          %p436 = pneg %p206
        $region14: #{tpu_custom_call.1} parent=11 // pred_check_branch
          %438 = sbr.rel (%p436) target = $region16
        $region15: #{tpu_custom_call.1} parent=11 // pred_region
          _
        $region16: #{tpu_custom_call.1} parent=11 // pred_fallthru
          _
        // Predicated region
        $region17: #{tpu_custom_call.1} parent=11 // pred_check
          %p439 = pneg %p227
        $region18: #{tpu_custom_call.1} parent=11 // pred_check_branch
          %441 = sbr.rel (%p439) target = $region20
        $region19: #{tpu_custom_call.1} parent=11 // pred_region
          _
        $region20: #{tpu_custom_call.1} parent=11 // pred_fallthru
          _
        // Predicated region
        $region21: #{tpu_custom_call.1} parent=11 // pred_check
          %p442 = pneg %p248
        $region22: #{tpu_custom_call.1} parent=11 // pred_check_branch
          %444 = sbr.rel (%p442) target = $region24
        $region23: #{tpu_custom_call.1} parent=11 // pred_region
          _
        $region24: #{tpu_custom_call.1} parent=11 // pred_fallthru
          _
        // Predicated region
        $region25: #{tpu_custom_call.1} parent=11 // pred_check
          %p445 = pneg %p269
        $region26: #{tpu_custom_call.1} parent=11 // pred_check_branch
          %447 = sbr.rel (%p445) target = $region28
        $region27: #{tpu_custom_call.1} parent=11 // pred_region
          _
        $region28: #{tpu_custom_call.1} parent=11 // pred_fallthru
          _
        // Predicated region
        $region29: #{tpu_custom_call.1} parent=11 // pred_check
          %p448 = pneg %p290
        $region30: #{tpu_custom_call.1} parent=11 // pred_check_branch
          %450 = sbr.rel (%p448) target = $region32
        $region31: #{tpu_custom_call.1} parent=11 // pred_region
          _
        $region32: #{tpu_custom_call.1} parent=11 // pred_fallthru
          _
        // Predicated region
        $region33: #{tpu_custom_call.1} parent=11 // pred_check
          %p451 = pneg %p311
        $region34: #{tpu_custom_call.1} parent=11 // pred_check_branch
          %453 = sbr.rel (%p451) target = $region36
        $region35: #{tpu_custom_call.1} parent=11 // pred_region
          _
        $region36: #{tpu_custom_call.1} parent=11 // pred_fallthru
          _
        // Predicated region
        $region37: #{tpu_custom_call.1} parent=11 // pred_check
          %p454 = pneg %p332
        $region38: #{tpu_custom_call.1} parent=11 // pred_check_branch
          %456 = sbr.rel (%p454) target = $region40
        $region39: #{tpu_custom_call.1} parent=11 // pred_region
          _
        $region40: #{tpu_custom_call.1} parent=11 // pred_fallthru
          _
        // Predicated region
        $region41: #{tpu_custom_call.1} parent=11 // pred_check
          %p457 = pneg %p353
        $region42: #{tpu_custom_call.1} parent=11 // pred_check_branch
          %459 = sbr.rel (%p457) target = $region44
        $region43: #{tpu_custom_call.1} parent=11 // pred_region
          _
        $region44: #{tpu_custom_call.1} parent=11 // pred_fallthru
          _
        // Predicated region
        $region45: #{tpu_custom_call.1} parent=11 // pred_check
          %p460 = pneg %p374
        $region46: #{tpu_custom_call.1} parent=11 // pred_check_branch
          %462 = sbr.rel (%p460) target = $region48
        $region47: #{tpu_custom_call.1} parent=11 // pred_region
          _
        $region48: #{tpu_custom_call.1} parent=11 // pred_fallthru
          _
        // Predicated region
        $region49: #{tpu_custom_call.1} parent=11 // pred_check
          %p463 = pneg %p395
        $region50: #{tpu_custom_call.1} parent=11 // pred_check_branch
          %465 = sbr.rel (%p463) target = $region52
        $region51: #{tpu_custom_call.1} parent=11 // pred_region
          _
        $region52: #{tpu_custom_call.1} parent=11 // pred_fallthru
          _
      $region12: #{tpu_custom_call.1} parent=5 // pred_fallthru
        _
      %p466 = scmp.lt.s32.totalorder %s29, 2
      // Predicated region
      $region53: #{tpu_custom_call.1} parent=5 // pred_check
        %p467 = pneg %p466
      $region54: #{tpu_custom_call.1} parent=5 // pred_check_branch
        %469 = sbr.rel (%p467) target = $region56
      $region55: #{tpu_custom_call.1} parent=5 // pred_region
        // Predicated region
        $region57: #{tpu_custom_call.1} parent=55 // pred_check
          %p470 = pneg %p49
        $region58: #{tpu_custom_call.1} parent=55 // pred_check_branch
          %472 = sbr.rel (%p470) target = $region60
        $region59: #{tpu_custom_call.1} parent=55 // pred_region
          %p473 = scmp.lt.s32.totalorder %s29, 1
          %s474 = scalar_select %p473, %s29, 1
          %s475 = smul.addr %s474, 16
          %s476 = smul.addr %s475, 8
          %s477 = scalar_lea.vmem %s0, %s476
        $region60: #{tpu_custom_call.1} parent=55 // pred_fallthru
          _
        // Predicated region
        $region61: #{tpu_custom_call.1} parent=55 // pred_check
          %p478 = pneg %p75
        $region62: #{tpu_custom_call.1} parent=55 // pred_check_branch
          %480 = sbr.rel (%p478) target = $region64
        $region63: #{tpu_custom_call.1} parent=55 // pred_region
          %p481 = scmp.lt.s32.totalorder %s29, 1
          %s482 = scalar_select %p481, %s29, 1
          %s483 = smul.addr %s482, 3
          %s484 = smul.addr %s483, 8
          %s485 = scalar_lea.vmem %s1, %s484
        $region64: #{tpu_custom_call.1} parent=55 // pred_fallthru
          _
        // Predicated region
        $region65: #{tpu_custom_call.1} parent=55 // pred_check
          %p486 = pneg %p101
        $region66: #{tpu_custom_call.1} parent=55 // pred_check_branch
          %488 = sbr.rel (%p486) target = $region68
        $region67: #{tpu_custom_call.1} parent=55 // pred_region
          %p489 = scmp.lt.s32.totalorder %s29, 1
          %s490 = scalar_select %p489, %s29, 1
          %s491 = smul.addr %s490, 3
          %s492 = smul.addr %s491, 8
          %s493 = scalar_lea.vmem %s2, %s492
        $region68: #{tpu_custom_call.1} parent=55 // pred_fallthru
          _
        // Predicated region
        $region69: #{tpu_custom_call.1} parent=55 // pred_check
          %p494 = pneg %p127
        $region70: #{tpu_custom_call.1} parent=55 // pred_check_branch
          %496 = sbr.rel (%p494) target = $region72
        $region71: #{tpu_custom_call.1} parent=55 // pred_region
          %p497 = scmp.lt.s32.totalorder %s29, 1
          %s498 = scalar_select %p497, %s29, 1
          %s499 = smul.addr %s498, 3
          %s500 = smul.addr %s499, 8
          %s501 = scalar_lea.vmem %s3, %s500
        $region72: #{tpu_custom_call.1} parent=55 // pred_fallthru
          _
        // Predicated region
        $region73: #{tpu_custom_call.1} parent=55 // pred_check
          %p502 = pneg %p153
        $region74: #{tpu_custom_call.1} parent=55 // pred_check_branch
          %504 = sbr.rel (%p502) target = $region76
        $region75: #{tpu_custom_call.1} parent=55 // pred_region
          %p505 = scmp.lt.s32.totalorder %s29, 1
          %s506 = scalar_select %p505, %s29, 1
          %s507 = scalar_lea.vmem %s4, %s506
        $region76: #{tpu_custom_call.1} parent=55 // pred_fallthru
          _
        // Predicated region
        $region77: #{tpu_custom_call.1} parent=55 // pred_check
          %p508 = pneg %p179
        $region78: #{tpu_custom_call.1} parent=55 // pred_check_branch
          %510 = sbr.rel (%p508) target = $region80
        $region79: #{tpu_custom_call.1} parent=55 // pred_region
          %p511 = scmp.lt.s32.totalorder %s29, 1
          %s512 = scalar_select %p511, %s29, 1
          %s513 = scalar_lea.vmem %s5, %s512
        $region80: #{tpu_custom_call.1} parent=55 // pred_fallthru
          _
      $region56: #{tpu_custom_call.1} parent=5 // pred_fallthru
        _
      %p514 = scmp.le.s32.totalorder 1, %s29
      %p515 = scmp.lt.s32.totalorder %s29, 3
      %p516 = pnand %p514, %p515
      %p517 = pneg %p516
      // Predicated region
      $region81: #{tpu_custom_call.1} parent=5 // pred_check
        _
      $region82: #{tpu_custom_call.1} parent=5 // pred_check_branch
        %519 = sbr.rel (%p516) target = $region84
      $region83: #{tpu_custom_call.1} parent=5 // pred_region
        %s520 = ssub.s32 %s29, 1
        %p521 = scmp.lt.s32.totalorder %s34, 1
        %s522 = scalar_select %p521, %s34, 1
        %s523 = smul.addr %s522, 16
        %s524 = smul.addr %s523, 8
        %s525 = scalar_lea.vmem %s0, %s524
        %p526 = pneg %p55
        %p527 = pneg %p52
        %p528 = scmp.lt.s32.totalorder %s34, 1
        %s529 = scalar_select %p528, %s34, 1
        %s530 = smul.addr %s529, 3
        %s531 = smul.addr %s530, 8
        %s532 = scalar_lea.vmem %s1, %s531
        %p533 = pneg %p81
        %p534 = pneg %p78
        %p535 = scmp.lt.s32.totalorder %s34, 1
        %s536 = scalar_select %p535, %s34, 1
        %s537 = smul.addr %s536, 3
        %s538 = smul.addr %s537, 8
        %s539 = scalar_lea.vmem %s2, %s538
        %p540 = pneg %p107
        %p541 = pneg %p104
        %p542 = scmp.lt.s32.totalorder %s34, 1
        %s543 = scalar_select %p542, %s34, 1
        %s544 = smul.addr %s543, 3
        %s545 = smul.addr %s544, 8
        %s546 = scalar_lea.vmem %s3, %s545
        %p547 = pneg %p133
        %p548 = pneg %p130
        %p549 = scmp.lt.s32.totalorder %s34, 1
        %s550 = scalar_select %p549, %s34, 1
        %s551 = scalar_lea.vmem %s4, %s550
        %p552 = pneg %p159
        %p553 = pneg %p156
        %p554 = scmp.lt.s32.totalorder %s34, 1
        %s555 = scalar_select %p554, %s34, 1
        %s556 = scalar_lea.vmem %s5, %s555
        %p557 = pneg %p185
        %p558 = pneg %p182
        %p559 = pneg %p206
        %p560 = pneg %p203
        %p561 = pneg %p227
        %p562 = pneg %p224
        %p563 = pneg %p248
        %p564 = pneg %p245
        %p565 = pneg %p269
        %p566 = pneg %p266
        %p567 = pneg %p290
        %p568 = pneg %p287
        %p569 = pneg %p311
        %p570 = pneg %p308
        %p571 = pneg %p332
        %p572 = pneg %p329
        %p573 = pneg %p353
        %p574 = pneg %p350
        %p575 = pneg %p374
        %p576 = pneg %p371
        %p577 = pneg %p395
        %p578 = pneg %p392
        %p579 = pneg %p421
        %p580 = pneg %p418
        %s581 = sand.u32 %s408, 1
        %s582 = scalar_lea.sflag [#allocation5], %s581
        %s583 = sand.u32 %s408, 1
        %s584 = smul.addr %s583, 8
        %s585 = scalar_lea.vmem [#allocation4], %s584
        %p586 = scmp.lt.s32.totalorder %s34, 1
        %s587 = scalar_select %p586, %s34, 1
        %s588 = smul.addr %s587, 16
        %s589 = smul.addr %s588, 8
        %s590 = scalar_lea.vmem %s0, %s589
        %p591 = scmp.lt.s32.totalorder %s34, 1
        %s592 = scalar_select %p591, %s34, 1
        %s593 = smul.addr %s592, 3
        %s594 = smul.addr %s593, 8
        %s595 = scalar_lea.vmem %s1, %s594
        %p596 = scmp.lt.s32.totalorder %s34, 1
        %s597 = scalar_select %p596, %s34, 1
        %s598 = smul.addr %s597, 3
        %s599 = smul.addr %s598, 8
        %s600 = scalar_lea.vmem %s2, %s599
        %p601 = scmp.lt.s32.totalorder %s34, 1
        %s602 = scalar_select %p601, %s34, 1
        %s603 = smul.addr %s602, 3
        %s604 = smul.addr %s603, 8
        %s605 = scalar_lea.vmem %s3, %s604
        %p606 = scmp.lt.s32.totalorder %s34, 1
        %s607 = scalar_select %p606, %s34, 1
        %s608 = scalar_lea.vmem %s4, %s607
        %p609 = scmp.lt.s32.totalorder %s34, 1
        %s610 = scalar_select %p609, %s34, 1
        %s611 = scalar_lea.vmem %s5, %s610
        %v612 = vld [vmem:[%s590] sm:$0xff]
        %v613 = vld [vmem:[%s590 + $0x8] sm:$0xff]
        %v614 = vld [vmem:[%s590 + $0x10] sm:$0xff]
        %v615 = vld [vmem:[%s590 + $0x18] sm:$0xff]
        %v616 = vld [vmem:[%s590 + $0x20] sm:$0xff]
        %v617 = vld [vmem:[%s590 + $0x28] sm:$0xff]
        %v618 = vld [vmem:[%s590 + $0x30] sm:$0xff]
        %v619 = vld [vmem:[%s590 + $0x38] sm:$0xff]
        %v620 = vld [vmem:[%s590 + $0x40] sm:$0xff]
        %v621 = vld [vmem:[%s590 + $0x48] sm:$0xff]
        %v622 = vld [vmem:[%s590 + $0x50] sm:$0xff]
        %v623 = vld [vmem:[%s590 + $0x58] sm:$0xff]
        %v624 = vld [vmem:[%s590 + $0x60] sm:$0xff]
        %v625 = vld [vmem:[%s590 + $0x68] sm:$0xff]
        %v626 = vld [vmem:[%s590 + $0x70] sm:$0xff]
        %v627 = vld [vmem:[%s590 + $0x78] sm:$0xff]
        %v628 = vld [vmem:[%s595] sm:$0xff]
        %v629 = vld [vmem:[%s595 + $0x8] sm:$0xff]
        %v630 = vld [vmem:[%s595 + $0x10] sm:$0xff]
        %v631 = vld [vmem:[%s600] sm:$0xff]
        %v632 = vld [vmem:[%s600 + $0x8] sm:$0xff]
        %v633 = vld [vmem:[%s600 + $0x10] sm:$0xff]
        %v634 = vld [vmem:[%s605] sm:$0xff]
        %v635 = vld [vmem:[%s605 + $0x8] sm:$0xff]
        %v636 = vld [vmem:[%s605 + $0x10] sm:$0xff]
        %v637 = vld [vmem:[%s608] sm:$0x1]
        %v638 = vld [vmem:[%s611] sm:$0x1]
        %v639 = vlaneseq
        %v640 = vand.u32 %v639, 127
        %641 = vset.pattern.permute.xlu0 0
        %642 = vperm.xlu0 %641, %v631
        %v643 = vpop.permute.xlu0 %642
        %644 = vset.pattern.permute.xlu0 0
        %645 = vperm.xlu0 %644, %v632
        %v646 = vpop.permute.xlu0 %645
        %647 = vset.pattern.permute.xlu0 0
        %648 = vperm.xlu0 %647, %v633
        %v649 = vpop.permute.xlu0 %648
        %vm650 = vcmp.eq.s32.totalorder %v640, %v643
        %vm651 = vcmp.eq.s32.totalorder %v640, %v646
        %vm652 = vcmp.eq.s32.totalorder %v640, %v649
        %v653 = vsel %vm650, 1, 0
        %v654 = vsel %vm651, 1, 0
        %v655 = vsel %vm652, 1, 0
        %v656 = vcvt.s32.f32 %v653
        %v657 = vcvt.s32.f32 %v654
        %v658 = vcvt.s32.f32 %v655
        %659 = vset.pattern.permute.xlu0 0
        %660 = vperm.xlu0 %659, %v634
        %v661 = vpop.permute.xlu0 %660
        %662 = vset.pattern.permute.xlu0 0
        %663 = vperm.xlu0 %662, %v635
        %v664 = vpop.permute.xlu0 %663
        %665 = vset.pattern.permute.xlu0 0
        %666 = vperm.xlu0 %665, %v636
        %v667 = vpop.permute.xlu0 %666
        %vm668 = vcmp.eq.s32.totalorder %v640, %v661
        %vm669 = vcmp.eq.s32.totalorder %v640, %v664
        %vm670 = vcmp.eq.s32.totalorder %v640, %v667
        %v671 = vsel %vm668, 1, 0
        %v672 = vsel %vm669, 1, 0
        %v673 = vsel %vm670, 1, 0
        %v674 = vcvt.s32.f32 %v671
        %v675 = vcvt.s32.f32 %v672
        %v676 = vcvt.s32.f32 %v673
        %v677 = vlaneseq
        %v678 = vshrl.u32 %v677, 7
        %v679 = vadd.s32 %v678, 8
        %v680 = vadd.s32 %v678, 16
        %v681 = vadd.s32 %v678, 24
        %v682 = vadd.s32 %v678, 32
        %v683 = vadd.s32 %v678, 40
        %v684 = vadd.s32 %v678, 48
        %v685 = vadd.s32 %v678, 56
        %v686 = vadd.s32 %v678, 64
        %v687 = vadd.s32 %v678, 72
        %v688 = vadd.s32 %v678, 80
        %v689 = vadd.s32 %v678, 88
        %v690 = vadd.s32 %v678, 96
        %v691 = vadd.s32 %v678, 104
        %v692 = vadd.s32 %v678, 112
        %v693 = vadd.s32 %v678, 120
        %v694 = vlaneseq
        %v695 = vshrl.u32 %v694, 7
        %v696 = vsub.s32 0, %v695
        %v697 = vrot.slane %v637, %v696
        %vm698 = vcmp.eq.s32.totalorder %v678, %v697
        %vm699 = vcmp.eq.s32.totalorder %v679, %v697
        %vm700 = vcmp.eq.s32.totalorder %v680, %v697
        %vm701 = vcmp.eq.s32.totalorder %v681, %v697
        %vm702 = vcmp.eq.s32.totalorder %v682, %v697
        %vm703 = vcmp.eq.s32.totalorder %v683, %v697
        %vm704 = vcmp.eq.s32.totalorder %v684, %v697
        %vm705 = vcmp.eq.s32.totalorder %v685, %v697
        %vm706 = vcmp.eq.s32.totalorder %v686, %v697
        %vm707 = vcmp.eq.s32.totalorder %v687, %v697
        %vm708 = vcmp.eq.s32.totalorder %v688, %v697
        %vm709 = vcmp.eq.s32.totalorder %v689, %v697
        %vm710 = vcmp.eq.s32.totalorder %v690, %v697
        %vm711 = vcmp.eq.s32.totalorder %v691, %v697
        %vm712 = vcmp.eq.s32.totalorder %v692, %v697
        %vm713 = vcmp.eq.s32.totalorder %v693, %v697
        %v714 = vsel %vm698, 1, 0
        %v715 = vsel %vm699, 1, 0
        %v716 = vsel %vm700, 1, 0
        %v717 = vsel %vm701, 1, 0
        %v718 = vsel %vm702, 1, 0
        %v719 = vsel %vm703, 1, 0
        %v720 = vsel %vm704, 1, 0
        %v721 = vsel %vm705, 1, 0
        %v722 = vsel %vm706, 1, 0
        %v723 = vsel %vm707, 1, 0
        %v724 = vsel %vm708, 1, 0
        %v725 = vsel %vm709, 1, 0
        %v726 = vsel %vm710, 1, 0
        %v727 = vsel %vm711, 1, 0
        %v728 = vsel %vm712, 1, 0
        %v729 = vsel %vm713, 1, 0
        %v730 = vcvt.s32.f32 %v714
        %v731 = vcvt.s32.f32 %v715
        %v732 = vcvt.s32.f32 %v716
        %v733 = vcvt.s32.f32 %v717
        %v734 = vcvt.s32.f32 %v718
        %v735 = vcvt.s32.f32 %v719
        %v736 = vcvt.s32.f32 %v720
        %v737 = vcvt.s32.f32 %v721
        %v738 = vcvt.s32.f32 %v722
        %v739 = vcvt.s32.f32 %v723
        %v740 = vcvt.s32.f32 %v724
        %v741 = vcvt.s32.f32 %v725
        %v742 = vcvt.s32.f32 %v726
        %v743 = vcvt.s32.f32 %v727
        %v744 = vcvt.s32.f32 %v728
        %v745 = vcvt.s32.f32 %v729
        %v746 = vlaneseq
        %v747 = vshrl.u32 %v746, 7
        %v748 = vsub.s32 0, %v747
        %v749 = vrot.slane %v638, %v748
        %vm750 = vcmp.lt.s32.totalorder %v678, %v749
        %vm751 = vcmp.lt.s32.totalorder %v679, %v749
        %vm752 = vcmp.lt.s32.totalorder %v680, %v749
        %vm753 = vcmp.lt.s32.totalorder %v681, %v749
        %vm754 = vcmp.lt.s32.totalorder %v682, %v749
        %vm755 = vcmp.lt.s32.totalorder %v683, %v749
        %vm756 = vcmp.lt.s32.totalorder %v684, %v749
        %vm757 = vcmp.lt.s32.totalorder %v685, %v749
        %vm758 = vcmp.lt.s32.totalorder %v686, %v749
        %vm759 = vcmp.lt.s32.totalorder %v687, %v749
        %vm760 = vcmp.lt.s32.totalorder %v688, %v749
        %vm761 = vcmp.lt.s32.totalorder %v689, %v749
        %vm762 = vcmp.lt.s32.totalorder %v690, %v749
        %vm763 = vcmp.lt.s32.totalorder %v691, %v749
        %vm764 = vcmp.lt.s32.totalorder %v692, %v749
        %vm765 = vcmp.lt.s32.totalorder %v693, %v749
        %v766 = vsel %vm750, 1, 0
        %v767 = vsel %vm751, 1, 0
        %v768 = vsel %vm752, 1, 0
        %v769 = vsel %vm753, 1, 0
        %v770 = vsel %vm754, 1, 0
        %v771 = vsel %vm755, 1, 0
        %v772 = vsel %vm756, 1, 0
        %v773 = vsel %vm757, 1, 0
        %v774 = vsel %vm758, 1, 0
        %v775 = vsel %vm759, 1, 0
        %v776 = vsel %vm760, 1, 0
        %v777 = vsel %vm761, 1, 0
        %v778 = vsel %vm762, 1, 0
        %v779 = vsel %vm763, 1, 0
        %v780 = vsel %vm764, 1, 0
        %v781 = vsel %vm765, 1, 0
        %v782 = vcvt.s32.f32 %v766
        %v783 = vcvt.s32.f32 %v767
        %v784 = vcvt.s32.f32 %v768
        %v785 = vcvt.s32.f32 %v769
        %v786 = vcvt.s32.f32 %v770
        %v787 = vcvt.s32.f32 %v771
        %v788 = vcvt.s32.f32 %v772
        %v789 = vcvt.s32.f32 %v773
        %v790 = vcvt.s32.f32 %v774
        %v791 = vcvt.s32.f32 %v775
        %v792 = vcvt.s32.f32 %v776
        %v793 = vcvt.s32.f32 %v777
        %v794 = vcvt.s32.f32 %v778
        %v795 = vcvt.s32.f32 %v779
        %v796 = vcvt.s32.f32 %v780
        %v797 = vcvt.s32.f32 %v781
        %v798 = vld [vmem:[%s6] sm:$0xff]
        %v799 = vld [vmem:[%s6 + $0x8] sm:$0xf]
        %vm800 = vcmask 97280
        %v802 = vsel %vm800, %v612, 0
        %v805 = vsel %vm800, %v613, 0
        %v808 = vsel %vm800, %v614, 0
        %v811 = vsel %vm800, %v615, 0
        %v814 = vsel %vm800, %v616, 0
        %v817 = vsel %vm800, %v617, 0
        %v820 = vsel %vm800, %v618, 0
        %v823 = vsel %vm800, %v619, 0
        %v826 = vsel %vm800, %v620, 0
        %v829 = vsel %vm800, %v621, 0
        %v832 = vsel %vm800, %v622, 0
        %v835 = vsel %vm800, %v623, 0
        %v838 = vsel %vm800, %v624, 0
        %v841 = vsel %vm800, %v625, 0
        %v844 = vsel %vm800, %v626, 0
        %v847 = vsel %vm800, %v627, 0
        %vm849 = vcmask 1043456
        %v851 = vsel %vm849, %v799, 0
        %853 = vmatprep.subr.mxu0 0.0
        %854 = vmatpush1.msra.mxu0 %v798
        %855 = vmatprep.subr.mxu0 0.0
        %856 = vmatpush1.msra.mxu0 %v851
        %857 = vmatprep.subr.mxu0 0.0
        %858 = vmatpush1.msra.mxu0 0.0
        %859 = vmatprep.subr.mxu0 0.0
        %860 = vmatpush1.msra.mxu0 0.0
        %861 = vmatprep.subr.mxu0 0.0
        %862 = vmatpush1.msra.mxu0 0.0
        %863 = vmatprep.subr.mxu0 0.0
        %864 = vmatpush1.msra.mxu0 0.0
        %865 = vmatprep.subr.mxu0 0.0
        %866 = vmatpush1.msra.mxu0 0.0
        %867 = vmatprep.subr.mxu0 0.0
        %868 = vmatpush1.msra.mxu0 0.0
        %869 = vmatprep.subr.mxu0 0.0
        %870 = vmatpush1.msra.mxu0 0.0
        %871 = vmatprep.subr.mxu0 0.0
        %872 = vmatpush1.msra.mxu0 0.0
        %873 = vmatprep.subr.mxu0 0.0
        %874 = vmatpush1.msra.mxu0 0.0
        %875 = vmatprep.subr.mxu0 0.0
        %876 = vmatpush1.msra.mxu0 0.0
        %877 = vmatprep.subr.mxu0 0.0
        %878 = vmatpush1.msra.mxu0 0.0
        %879 = vmatprep.subr.mxu0 0.0
        %880 = vmatpush1.msra.mxu0 0.0
        %881 = vmatprep.subr.mxu0 0.0
        %882 = vmatpush1.msra.mxu0 0.0
        %883 = vmatprep.subr.mxu0 0.0
        %884 = vmatpush1.msra.mxu0 0.0
        %885 = vmatprep.subr.mxu0 0.0
        %886 = vmatpush1.msra.mxu0 0.0
        %887 = vmatprep.subr.mxu0 0.0
        %888 = vmatpush1.msra.mxu0 0.0
        %889 = vmatprep.subr.mxu0 0.0
        %890 = vmatpush1.msra.mxu0 0.0
        %891 = vmatprep.subr.mxu0 0.0
        %892 = vmatpush1.msra.mxu0 0.0
        %893 = vmatprep.subr.mxu0 0.0
        %894 = vmatpush1.msra.mxu0 0.0
        %895 = vmatprep.subr.mxu0 0.0
        %896 = vmatpush1.msra.mxu0 0.0
        %897 = vmatprep.subr.mxu0 0.0
        %898 = vmatpush1.msra.mxu0 0.0
        %899 = vmatprep.subr.mxu0 0.0
        %900 = vmatpush1.msra.mxu0 0.0
        %901 = vmatprep.subr.mxu0 0.0
        %902 = vmatpush1.msra.mxu0 0.0
        %903 = vmatprep.subr.mxu0 0.0
        %904 = vmatpush1.msra.mxu0 0.0
        %905 = vmatprep.subr.mxu0 0.0
        %906 = vmatpush1.msra.mxu0 0.0
        %907 = vmatprep.subr.mxu0 0.0
        %908 = vmatpush1.msra.mxu0 0.0
        %909 = vmatprep.subr.mxu0 0.0
        %910 = vmatpush1.msra.mxu0 0.0
        %911 = vmatprep.subr.mxu0 0.0
        %912 = vmatpush1.msra.mxu0 0.0
        %913 = vmatprep.subr.mxu0 0.0
        %914 = vmatpush1.msra.mxu0 0.0
        %915 = vmatprep.subr.mxu0 0.0
        %916 = vmatpush1.msra.mxu0 0.0
        %917 = vmatprep.mubr.f32.mxu0 0.0
        %918 = vmatmul.mubr.f32.gmra.mrb[0].mxu0 %v802
        %v919 = vpop.f32.mrb[0].mxu0
        %v920 = vadd.f32 0.0, %v919
        %v921 = vpop.f32.mrb[0].mxu0
        %922 = vmatprep.mubr.f32.mxu0 0.0
        %923 = vmatmul.mubr.f32.gmra.mrb[0].mxu0 %v805
        %v924 = vpop.f32.mrb[0].mxu0
        %v925 = vadd.f32 0.0, %v924
        %v926 = vpop.f32.mrb[0].mxu0
        %927 = vmatprep.mubr.f32.mxu0 0.0
        %928 = vmatmul.mubr.f32.gmra.mrb[0].mxu0 %v808
        %v929 = vpop.f32.mrb[0].mxu0
        %v930 = vadd.f32 0.0, %v929
        %v931 = vpop.f32.mrb[0].mxu0
        %932 = vmatprep.mubr.f32.mxu0 0.0
        %933 = vmatmul.mubr.f32.gmra.mrb[0].mxu0 %v811
        %v934 = vpop.f32.mrb[0].mxu0
        %v935 = vadd.f32 0.0, %v934
        %v936 = vpop.f32.mrb[0].mxu0
        %937 = vmatprep.mubr.f32.mxu0 0.0
        %938 = vmatmul.mubr.f32.gmra.mrb[0].mxu0 %v814
        %v939 = vpop.f32.mrb[0].mxu0
        %v940 = vadd.f32 0.0, %v939
        %v941 = vpop.f32.mrb[0].mxu0
        %942 = vmatprep.mubr.f32.mxu0 0.0
        %943 = vmatmul.mubr.f32.gmra.mrb[0].mxu0 %v817
        %v944 = vpop.f32.mrb[0].mxu0
        %v945 = vadd.f32 0.0, %v944
        %v946 = vpop.f32.mrb[0].mxu0
        %947 = vmatprep.mubr.f32.mxu0 0.0
        %948 = vmatmul.mubr.f32.gmra.mrb[0].mxu0 %v820
        %v949 = vpop.f32.mrb[0].mxu0
        %v950 = vadd.f32 0.0, %v949
        %v951 = vpop.f32.mrb[0].mxu0
        %952 = vmatprep.mubr.f32.mxu0 0.0
        %953 = vmatmul.mubr.f32.gmra.mrb[0].mxu0 %v823
        %v954 = vpop.f32.mrb[0].mxu0
        %v955 = vadd.f32 0.0, %v954
        %v956 = vpop.f32.mrb[0].mxu0
        %957 = vmatprep.mubr.f32.mxu0 0.0
        %958 = vmatmul.mubr.f32.gmra.mrb[0].mxu0 %v826
        %v959 = vpop.f32.mrb[0].mxu0
        %v960 = vadd.f32 0.0, %v959
        %v961 = vpop.f32.mrb[0].mxu0
        %962 = vmatprep.mubr.f32.mxu0 0.0
        %963 = vmatmul.mubr.f32.gmra.mrb[0].mxu0 %v829
        %v964 = vpop.f32.mrb[0].mxu0
        %v965 = vadd.f32 0.0, %v964
        %v966 = vpop.f32.mrb[0].mxu0
        %967 = vmatprep.mubr.f32.mxu0 0.0
        %968 = vmatmul.mubr.f32.gmra.mrb[0].mxu0 %v832
        %v969 = vpop.f32.mrb[0].mxu0
        %v970 = vadd.f32 0.0, %v969
        %v971 = vpop.f32.mrb[0].mxu0
        %972 = vmatprep.mubr.f32.mxu0 0.0
        %973 = vmatmul.mubr.f32.gmra.mrb[0].mxu0 %v835
        %v974 = vpop.f32.mrb[0].mxu0
        %v975 = vadd.f32 0.0, %v974
        %v976 = vpop.f32.mrb[0].mxu0
        %977 = vmatprep.mubr.f32.mxu0 0.0
        %978 = vmatmul.mubr.f32.gmra.mrb[0].mxu0 %v838
        %v979 = vpop.f32.mrb[0].mxu0
        %v980 = vadd.f32 0.0, %v979
        %v981 = vpop.f32.mrb[0].mxu0
        %982 = vmatprep.mubr.f32.mxu0 0.0
        %983 = vmatmul.mubr.f32.gmra.mrb[0].mxu0 %v841
        %v984 = vpop.f32.mrb[0].mxu0
        %v985 = vadd.f32 0.0, %v984
        %v986 = vpop.f32.mrb[0].mxu0
        %987 = vmatprep.mubr.f32.mxu0 0.0
        %988 = vmatmul.mubr.f32.gmra.mrb[0].mxu0 %v844
        %v989 = vpop.f32.mrb[0].mxu0
        %v990 = vadd.f32 0.0, %v989
        %v991 = vpop.f32.mrb[0].mxu0
        %992 = vmatprep.mubr.f32.mxu0 0.0
        %993 = vmatmul.mubr.f32.gmra.mrb[0].mxu0 %v847
        %v994 = vpop.f32.mrb[0].mxu0
        %v995 = vadd.f32 0.0, %v994
        %v996 = vpop.f32.mrb[0].mxu0
        %997 = vdwg.mxu0
        %v998 = vld [vmem:[%s7] sm:$0x7]
        %vm999 = vcmask 23552
        %v1001 = vsel %vm999, %v628, 0
        %v1004 = vsel %vm999, %v629, 0
        %v1007 = vsel %vm999, %v630, 0
        %vm1009 = vcmask 1042432
        %v1011 = vsel %vm1009, %v998, 0
        %1013 = vmatprep.subr.mxu0 0.0
        %1014 = vmatpush1.msra.mxu0 %v1011
        %1015 = vmatprep.subr.mxu0 0.0
        %1016 = vmatpush1.msra.mxu0 0.0
        %1017 = vmatprep.subr.mxu0 0.0
        %1018 = vmatpush1.msra.mxu0 0.0
        %1019 = vmatprep.subr.mxu0 0.0
        %1020 = vmatpush1.msra.mxu0 0.0
        %1021 = vmatprep.subr.mxu0 0.0
        %1022 = vmatpush1.msra.mxu0 0.0
        %1023 = vmatprep.subr.mxu0 0.0
        %1024 = vmatpush1.msra.mxu0 0.0
        %1025 = vmatprep.subr.mxu0 0.0
        %1026 = vmatpush1.msra.mxu0 0.0
        %1027 = vmatprep.subr.mxu0 0.0
        %1028 = vmatpush1.msra.mxu0 0.0
        %1029 = vmatprep.subr.mxu0 0.0
        %1030 = vmatpush1.msra.mxu0 0.0
        %1031 = vmatprep.subr.mxu0 0.0
        %1032 = vmatpush1.msra.mxu0 0.0
        %1033 = vmatprep.subr.mxu0 0.0
        %1034 = vmatpush1.msra.mxu0 0.0
        %1035 = vmatprep.subr.mxu0 0.0
        %1036 = vmatpush1.msra.mxu0 0.0
        %1037 = vmatprep.subr.mxu0 0.0
        %1038 = vmatpush1.msra.mxu0 0.0
        %1039 = vmatprep.subr.mxu0 0.0
        %1040 = vmatpush1.msra.mxu0 0.0
        %1041 = vmatprep.subr.mxu0 0.0
        %1042 = vmatpush1.msra.mxu0 0.0
        %1043 = vmatprep.subr.mxu0 0.0
        %1044 = vmatpush1.msra.mxu0 0.0
        %1045 = vmatprep.subr.mxu0 0.0
        %1046 = vmatpush1.msra.mxu0 0.0
        %1047 = vmatprep.subr.mxu0 0.0
        %1048 = vmatpush1.msra.mxu0 0.0
        %1049 = vmatprep.subr.mxu0 0.0
        %1050 = vmatpush1.msra.mxu0 0.0
        %1051 = vmatprep.subr.mxu0 0.0
        %1052 = vmatpush1.msra.mxu0 0.0
        %1053 = vmatprep.subr.mxu0 0.0
        %1054 = vmatpush1.msra.mxu0 0.0
        %1055 = vmatprep.subr.mxu0 0.0
        %1056 = vmatpush1.msra.mxu0 0.0
        %1057 = vmatprep.subr.mxu0 0.0
        %1058 = vmatpush1.msra.mxu0 0.0
        %1059 = vmatprep.subr.mxu0 0.0
        %1060 = vmatpush1.msra.mxu0 0.0
        %1061 = vmatprep.subr.mxu0 0.0
        %1062 = vmatpush1.msra.mxu0 0.0
        %1063 = vmatprep.subr.mxu0 0.0
        %1064 = vmatpush1.msra.mxu0 0.0
        %1065 = vmatprep.subr.mxu0 0.0
        %1066 = vmatpush1.msra.mxu0 0.0
        %1067 = vmatprep.subr.mxu0 0.0
        %1068 = vmatpush1.msra.mxu0 0.0
        %1069 = vmatprep.subr.mxu0 0.0
        %1070 = vmatpush1.msra.mxu0 0.0
        %1071 = vmatprep.subr.mxu0 0.0
        %1072 = vmatpush1.msra.mxu0 0.0
        %1073 = vmatprep.subr.mxu0 0.0
        %1074 = vmatpush1.msra.mxu0 0.0
        %1075 = vmatprep.subr.mxu0 0.0
        %1076 = vmatpush1.msra.mxu0 0.0
        %1077 = vmatprep.mubr.f32.mxu0 0.0
        %1078 = vmatmul.mubr.f32.gmra.mrb[0].mxu0 %v1001
        %v1079 = vpop.f32.mrb[0].mxu0
        %v1080 = vadd.f32 0.0, %v1079
        %v1081 = vpop.f32.mrb[0].mxu0
        %1082 = vmatprep.mubr.f32.mxu0 0.0
        %1083 = vmatmul.mubr.f32.gmra.mrb[0].mxu0 %v1004
        %v1084 = vpop.f32.mrb[0].mxu0
        %v1085 = vadd.f32 0.0, %v1084
        %v1086 = vpop.f32.mrb[0].mxu0
        %1087 = vmatprep.mubr.f32.mxu0 0.0
        %1088 = vmatmul.mubr.f32.gmra.mrb[0].mxu0 %v1007
        %v1089 = vpop.f32.mrb[0].mxu0
        %v1090 = vadd.f32 0.0, %v1089
        %v1091 = vpop.f32.mrb[0].mxu0
        %1092 = vdwg.mxu0
        %v1093 = vld [vmem:[%s9] sm:$0x1]
        %v1095 = vlaneseq
        %v1096 = vshrl.u32 %v1095, 7
        %v1097 = vsub.s32 0, %v1096
        %v1098 = vrot.slane %v1093, %v1097
        %v1100 = vmul.f32 %v920, %v1098
        %v1101 = vmul.f32 %v925, %v1098
        %v1102 = vmul.f32 %v930, %v1098
        %v1103 = vmul.f32 %v935, %v1098
        %v1104 = vmul.f32 %v940, %v1098
        %v1105 = vmul.f32 %v945, %v1098
        %v1106 = vmul.f32 %v950, %v1098
        %v1107 = vmul.f32 %v955, %v1098
        %v1108 = vmul.f32 %v960, %v1098
        %v1109 = vmul.f32 %v965, %v1098
        %v1110 = vmul.f32 %v970, %v1098
        %v1111 = vmul.f32 %v975, %v1098
        %v1112 = vmul.f32 %v980, %v1098
        %v1113 = vmul.f32 %v985, %v1098
        %v1114 = vmul.f32 %v990, %v1098
        %v1115 = vmul.f32 %v995, %v1098
        %vm1116 = vcmask 261120
        %v1117 = vsel %vm1116, %v1100, 0.0
        %1118 = vadd.xlane.f32.xlu0 %v1117
        %v1119 = vpop.xlane.xlu0 %1118
        %v1120 = vsel %vm1116, %v1101, 0.0
        %1121 = vadd.xlane.f32.xlu0 %v1120
        %v1122 = vpop.xlane.xlu0 %1121
        %v1123 = vsel %vm1116, %v1102, 0.0
        %1124 = vadd.xlane.f32.xlu0 %v1123
        %v1125 = vpop.xlane.xlu0 %1124
        %v1126 = vsel %vm1116, %v1103, 0.0
        %1127 = vadd.xlane.f32.xlu0 %v1126
        %v1128 = vpop.xlane.xlu0 %1127
        %v1129 = vsel %vm1116, %v1104, 0.0
        %1130 = vadd.xlane.f32.xlu0 %v1129
        %v1131 = vpop.xlane.xlu0 %1130
        %v1132 = vsel %vm1116, %v1105, 0.0
        %1133 = vadd.xlane.f32.xlu0 %v1132
        %v1134 = vpop.xlane.xlu0 %1133
        %v1135 = vsel %vm1116, %v1106, 0.0
        %1136 = vadd.xlane.f32.xlu0 %v1135
        %v1137 = vpop.xlane.xlu0 %1136
        %v1138 = vsel %vm1116, %v1107, 0.0
        %1139 = vadd.xlane.f32.xlu0 %v1138
        %v1140 = vpop.xlane.xlu0 %1139
        %v1141 = vsel %vm1116, %v1108, 0.0
        %1142 = vadd.xlane.f32.xlu0 %v1141
        %v1143 = vpop.xlane.xlu0 %1142
        %v1144 = vsel %vm1116, %v1109, 0.0
        %1145 = vadd.xlane.f32.xlu0 %v1144
        %v1146 = vpop.xlane.xlu0 %1145
        %v1147 = vsel %vm1116, %v1110, 0.0
        %1148 = vadd.xlane.f32.xlu0 %v1147
        %v1149 = vpop.xlane.xlu0 %1148
        %v1150 = vsel %vm1116, %v1111, 0.0
        %1151 = vadd.xlane.f32.xlu0 %v1150
        %v1152 = vpop.xlane.xlu0 %1151
        %v1153 = vsel %vm1116, %v1112, 0.0
        %1154 = vadd.xlane.f32.xlu0 %v1153
        %v1155 = vpop.xlane.xlu0 %1154
        %v1156 = vsel %vm1116, %v1113, 0.0
        %1157 = vadd.xlane.f32.xlu0 %v1156
        %v1158 = vpop.xlane.xlu0 %1157
        %v1159 = vsel %vm1116, %v1114, 0.0
        %1160 = vadd.xlane.f32.xlu0 %v1159
        %v1161 = vpop.xlane.xlu0 %1160
        %v1162 = vsel %vm1116, %v1115, 0.0
        %1163 = vadd.xlane.f32.xlu0 %v1162
        %v1164 = vpop.xlane.xlu0 %1163
        %v1165 = vld [vmem:[%s10] sm:$0x1]
        %v1167 = vlaneseq
        %v1168 = vshrl.u32 %v1167, 7
        %v1169 = vsub.s32 0, %v1168
        %v1170 = vrot.slane %v1165, %v1169
        %v1172 = vmul.f32 %v1080, %v1170
        %v1173 = vmul.f32 %v1085, %v1170
        %v1174 = vmul.f32 %v1090, %v1170
        %v1175 = vsel %vm1116, %v1172, 0.0
        %1176 = vadd.xlane.f32.xlu0 %v1175
        %v1177 = vpop.xlane.xlu0 %1176
        %v1178 = vsel %vm1116, %v1173, 0.0
        %1179 = vadd.xlane.f32.xlu0 %v1178
        %v1180 = vpop.xlane.xlu0 %1179
        %v1181 = vsel %vm1116, %v1174, 0.0
        %1182 = vadd.xlane.f32.xlu0 %v1181
        %v1183 = vpop.xlane.xlu0 %1182
        %1184 = vmatprep.subr.mxu0 0.0
        %1185 = vmatpush1.msra.mxu0 %v920
        %1186 = vmatprep.subr.mxu0 0.0
        %1187 = vmatpush1.msra.mxu0 %v925
        %1188 = vmatprep.subr.mxu0 0.0
        %1189 = vmatpush1.msra.mxu0 %v930
        %1190 = vmatprep.subr.mxu0 0.0
        %1191 = vmatpush1.msra.mxu0 %v935
        %1192 = vmatprep.subr.mxu0 0.0
        %1193 = vmatpush1.msra.mxu0 %v940
        %1194 = vmatprep.subr.mxu0 0.0
        %1195 = vmatpush1.msra.mxu0 %v945
        %1196 = vmatprep.subr.mxu0 0.0
        %1197 = vmatpush1.msra.mxu0 %v950
        %1198 = vmatprep.subr.mxu0 0.0
        %1199 = vmatpush1.msra.mxu0 %v955
        %1200 = vmatprep.subr.mxu0 0.0
        %1201 = vmatpush1.msra.mxu0 %v960
        %1202 = vmatprep.subr.mxu0 0.0
        %1203 = vmatpush1.msra.mxu0 %v965
        %1204 = vmatprep.subr.mxu0 0.0
        %1205 = vmatpush1.msra.mxu0 %v970
        %1206 = vmatprep.subr.mxu0 0.0
        %1207 = vmatpush1.msra.mxu0 %v975
        %1208 = vmatprep.subr.mxu0 0.0
        %1209 = vmatpush1.msra.mxu0 %v980
        %1210 = vmatprep.subr.mxu0 0.0
        %1211 = vmatpush1.msra.mxu0 %v985
        %1212 = vmatprep.subr.mxu0 0.0
        %1213 = vmatpush1.msra.mxu0 %v990
        %1214 = vmatprep.subr.mxu0 0.0
        %1215 = vmatpush1.msra.mxu0 %v995
        %1216 = vmatprep.subr.mxu0 0.0
        %1217 = vmatpush1.msra.mxu0 0.0
        %1218 = vmatprep.subr.mxu0 0.0
        %1219 = vmatpush1.msra.mxu0 0.0
        %1220 = vmatprep.subr.mxu0 0.0
        %1221 = vmatpush1.msra.mxu0 0.0
        %1222 = vmatprep.subr.mxu0 0.0
        %1223 = vmatpush1.msra.mxu0 0.0
        %1224 = vmatprep.subr.mxu0 0.0
        %1225 = vmatpush1.msra.mxu0 0.0
        %1226 = vmatprep.subr.mxu0 0.0
        %1227 = vmatpush1.msra.mxu0 0.0
        %1228 = vmatprep.subr.mxu0 0.0
        %1229 = vmatpush1.msra.mxu0 0.0
        %1230 = vmatprep.subr.mxu0 0.0
        %1231 = vmatpush1.msra.mxu0 0.0
        %1232 = vmatprep.subr.mxu0 0.0
        %1233 = vmatpush1.msra.mxu0 0.0
        %1234 = vmatprep.subr.mxu0 0.0
        %1235 = vmatpush1.msra.mxu0 0.0
        %1236 = vmatprep.subr.mxu0 0.0
        %1237 = vmatpush1.msra.mxu0 0.0
        %1238 = vmatprep.subr.mxu0 0.0
        %1239 = vmatpush1.msra.mxu0 0.0
        %1240 = vmatprep.subr.mxu0 0.0
        %1241 = vmatpush1.msra.mxu0 0.0
        %1242 = vmatprep.subr.mxu0 0.0
        %1243 = vmatpush1.msra.mxu0 0.0
        %1244 = vmatprep.subr.mxu0 0.0
        %1245 = vmatpush1.msra.mxu0 0.0
        %1246 = vmatprep.subr.mxu0 0.0
        %1247 = vmatpush1.msra.mxu0 0.0
        %1248 = vmatprep.mubr.f32.mxu0 0.0
        %1249 = vmatmul.mubr.f32.gmra.mrb[0].mxu0 %v656
        %v1250 = vpop.f32.mrb[0].mxu0
        %v1251 = vadd.f32 0.0, %v1250
        %v1252 = vpop.f32.mrb[0].mxu0
        %1253 = vmatprep.mubr.f32.mxu0 0.0
        %1254 = vmatmul.mubr.f32.gmra.mrb[0].mxu0 %v657
        %v1255 = vpop.f32.mrb[0].mxu0
        %v1256 = vadd.f32 0.0, %v1255
        %v1257 = vpop.f32.mrb[0].mxu0
        %1258 = vmatprep.mubr.f32.mxu0 0.0
        %1259 = vmatmul.mubr.f32.gmra.mrb[0].mxu0 %v658
        %v1260 = vpop.f32.mrb[0].mxu0
        %v1261 = vadd.f32 0.0, %v1260
        %v1262 = vpop.f32.mrb[0].mxu0
        %1263 = vdwg.mxu0
        %v1264 = vld [vmem:[%s8] sm:$0x1]
        %v1266 = vlaneseq
        %v1267 = vshrl.u32 %v1266, 7
        %v1268 = vsub.s32 0, %v1267
        %v1269 = vrot.slane %v1264, %v1268
        %v1271 = vmul.f32 %v1251, %v1269
        %v1272 = vmul.f32 %v1256, %v1269
        %v1273 = vmul.f32 %v1261, %v1269
        %v1274 = vsel %vm1116, %v1271, 0.0
        %1275 = vadd.xlane.f32.xlu0 %v1274
        %v1276 = vpop.xlane.xlu0 %1275
        %v1277 = vsel %vm1116, %v1272, 0.0
        %1278 = vadd.xlane.f32.xlu0 %v1277
        %v1279 = vpop.xlane.xlu0 %1278
        %v1280 = vsel %vm1116, %v1273, 0.0
        %1281 = vadd.xlane.f32.xlu0 %v1280
        %v1282 = vpop.xlane.xlu0 %1281
        %1283 = vmatprep.subr.mxu0 0.0
        %1284 = vmatpush1.msra.mxu0 %v1119
        %1285 = vmatprep.subr.mxu0 0.0
        %1286 = vmatpush1.msra.mxu0 %v1122
        %1287 = vmatprep.subr.mxu0 0.0
        %1288 = vmatpush1.msra.mxu0 %v1125
        %1289 = vmatprep.subr.mxu0 0.0
        %1290 = vmatpush1.msra.mxu0 %v1128
        %1291 = vmatprep.subr.mxu0 0.0
        %1292 = vmatpush1.msra.mxu0 %v1131
        %1293 = vmatprep.subr.mxu0 0.0
        %1294 = vmatpush1.msra.mxu0 %v1134
        %1295 = vmatprep.subr.mxu0 0.0
        %1296 = vmatpush1.msra.mxu0 %v1137
        %1297 = vmatprep.subr.mxu0 0.0
        %1298 = vmatpush1.msra.mxu0 %v1140
        %1299 = vmatprep.subr.mxu0 0.0
        %1300 = vmatpush1.msra.mxu0 %v1143
        %1301 = vmatprep.subr.mxu0 0.0
        %1302 = vmatpush1.msra.mxu0 %v1146
        %1303 = vmatprep.subr.mxu0 0.0
        %1304 = vmatpush1.msra.mxu0 %v1149
        %1305 = vmatprep.subr.mxu0 0.0
        %1306 = vmatpush1.msra.mxu0 %v1152
        %1307 = vmatprep.subr.mxu0 0.0
        %1308 = vmatpush1.msra.mxu0 %v1155
        %1309 = vmatprep.subr.mxu0 0.0
        %1310 = vmatpush1.msra.mxu0 %v1158
        %1311 = vmatprep.subr.mxu0 0.0
        %1312 = vmatpush1.msra.mxu0 %v1161
        %1313 = vmatprep.subr.mxu0 0.0
        %1314 = vmatpush1.msra.mxu0 %v1164
        %1315 = vmatprep.subr.mxu0 0.0
        %1316 = vmatpush1.msra.mxu0 0.0
        %1317 = vmatprep.subr.mxu0 0.0
        %1318 = vmatpush1.msra.mxu0 0.0
        %1319 = vmatprep.subr.mxu0 0.0
        %1320 = vmatpush1.msra.mxu0 0.0
        %1321 = vmatprep.subr.mxu0 0.0
        %1322 = vmatpush1.msra.mxu0 0.0
        %1323 = vmatprep.subr.mxu0 0.0
        %1324 = vmatpush1.msra.mxu0 0.0
        %1325 = vmatprep.subr.mxu0 0.0
        %1326 = vmatpush1.msra.mxu0 0.0
        %1327 = vmatprep.subr.mxu0 0.0
        %1328 = vmatpush1.msra.mxu0 0.0
        %1329 = vmatprep.subr.mxu0 0.0
        %1330 = vmatpush1.msra.mxu0 0.0
        %1331 = vmatprep.subr.mxu0 0.0
        %1332 = vmatpush1.msra.mxu0 0.0
        %1333 = vmatprep.subr.mxu0 0.0
        %1334 = vmatpush1.msra.mxu0 0.0
        %1335 = vmatprep.subr.mxu0 0.0
        %1336 = vmatpush1.msra.mxu0 0.0
        %1337 = vmatprep.subr.mxu0 0.0
        %1338 = vmatpush1.msra.mxu0 0.0
        %1339 = vmatprep.subr.mxu0 0.0
        %1340 = vmatpush1.msra.mxu0 0.0
        %1341 = vmatprep.subr.mxu0 0.0
        %1342 = vmatpush1.msra.mxu0 0.0
        %1343 = vmatprep.subr.mxu0 0.0
        %1344 = vmatpush1.msra.mxu0 0.0
        %1345 = vmatprep.subr.mxu0 0.0
        %1346 = vmatpush1.msra.mxu0 0.0
        %1347 = vmatprep.mubr.f32.mxu0 0.0
        %1348 = vmatmul.mubr.f32.gmra.mrb[0].mxu0 %v674
        %v1349 = vpop.f32.mrb[0].mxu0
        %v1350 = vadd.f32 0.0, %v1349
        %v1351 = vpop.f32.mrb[0].mxu0
        %1352 = vmatprep.mubr.f32.mxu0 0.0
        %1353 = vmatmul.mubr.f32.gmra.mrb[0].mxu0 %v675
        %v1354 = vpop.f32.mrb[0].mxu0
        %v1355 = vadd.f32 0.0, %v1354
        %v1356 = vpop.f32.mrb[0].mxu0
        %1357 = vmatprep.mubr.f32.mxu0 0.0
        %1358 = vmatmul.mubr.f32.gmra.mrb[0].mxu0 %v676
        %v1359 = vpop.f32.mrb[0].mxu0
        %v1360 = vadd.f32 0.0, %v1359
        %v1361 = vpop.f32.mrb[0].mxu0
        %1362 = vdwg.mxu0
        %v1363 = vadd.f32 %v1276, %v1350
        %v1364 = vadd.f32 %v1279, %v1355
        %v1365 = vadd.f32 %v1282, %v1360
        %v1366 = vadd.f32 %v1363, %v1177
        %v1367 = vadd.f32 %v1364, %v1180
        %v1368 = vadd.f32 %v1365, %v1183
        %vm1369 = vcmp.gt.f32.partialorder %v1366, 0.0
        %vm1370 = vcmp.gt.f32.partialorder %v1367, 0.0
        %vm1371 = vcmp.gt.f32.partialorder %v1368, 0.0
        %v1372 = vmul.f32 %v1366, 0.2
        %v1373 = vmul.f32 %v1367, 0.2
        %v1374 = vmul.f32 %v1368, 0.2
        %v1375 = vsel %vm1369, %v1366, %v1372
        %v1376 = vsel %vm1370, %v1367, %v1373
        %v1377 = vsel %vm1371, %v1368, %v1374
        %v1378 = vsub.f32 %v674, 1.0
        %v1379 = vsub.f32 %v675, 1.0
        %v1380 = vsub.f32 %v676, 1.0
        %v1381 = vmul.f32 %v1378, 1e+30
        %v1382 = vmul.f32 %v1379, 1e+30
        %v1383 = vmul.f32 %v1380, 1e+30
        %1385 = vset.pattern.permute.xlu0 0
        %1386 = vperm.xlu0 %1385, %v1375
        %v1387 = vpop.permute.xlu0 %1386
        %1390 = vset.pattern.permute.xlu0 0
        %1391 = vperm.xlu0 %1390, %v1376
        %v1392 = vpop.permute.xlu0 %1391
        %1395 = vset.pattern.permute.xlu0 0
        %1396 = vperm.xlu0 %1395, %v1377
        %v1397 = vpop.permute.xlu0 %1396
        %v1399 = vadd.f32 %v1387, %v1381
        %v1400 = vadd.f32 %v1392, %v1382
        %v1401 = vadd.f32 %v1397, %v1383
        %v1402 = vmax.f32 %v1399, %v1400
        %v1403 = vmax.f32 %v1402, %v1401
        %v1404 = vrot.slane %v1403, 4
        %v1405 = vmax.f32 %v1403, %v1404
        %v1406 = vrot.slane %v1405, 2
        %v1407 = vmax.f32 %v1405, %v1406
        %v1408 = vrot.slane %v1407, 1
        %v1409 = vmax.f32 %v1407, %v1408
        %v1410 = vmul.f32 %v674, %v1409
        %v1411 = vmul.f32 %v675, %v1409
        %v1412 = vmul.f32 %v676, %v1409
        %1413 = vadd.xlane.f32.xlu0 %v1410
        %v1414 = vpop.xlane.xlu0 %1413
        %1415 = vadd.xlane.f32.xlu0 %v1411
        %v1416 = vpop.xlane.xlu0 %1415
        %1417 = vadd.xlane.f32.xlu0 %v1412
        %v1418 = vpop.xlane.xlu0 %1417
        %v1419 = vsub.f32 %v1375, %v1414
        %v1420 = vsub.f32 %v1376, %v1416
        %v1421 = vsub.f32 %v1377, %v1418
        %v1422 = vmul.f32 %v1419, 1.442695
        %v1423 = vpow.pop %v1422
        %v1424 = vmul.f32 %v1420, 1.442695
        %v1425 = vpow.pop %v1424
        %v1426 = vmul.f32 %v1421, 1.442695
        %v1427 = vpow.pop %v1426
        %1429 = vset.pattern.permute.xlu0 0
        %1430 = vperm.xlu0 %1429, %v1423
        %v1431 = vpop.permute.xlu0 %1430
        %1434 = vset.pattern.permute.xlu0 0
        %1435 = vperm.xlu0 %1434, %v1425
        %v1436 = vpop.permute.xlu0 %1435
        %1439 = vset.pattern.permute.xlu0 0
        %1440 = vperm.xlu0 %1439, %v1427
        %v1441 = vpop.permute.xlu0 %1440
        %v1443 = vmul.f32 %v1431, %v1251
        %v1444 = vmul.f32 %v1436, %v1256
        %v1445 = vmul.f32 %v1441, %v1261
        %vm1446 = vcmask 195584
        %v1448 = vsel %vm1446, %v730, 0
        %v1451 = vsel %vm1446, %v731, 0
        %v1454 = vsel %vm1446, %v732, 0
        %v1457 = vsel %vm1446, %v733, 0
        %v1460 = vsel %vm1446, %v734, 0
        %v1463 = vsel %vm1446, %v735, 0
        %v1466 = vsel %vm1446, %v736, 0
        %v1469 = vsel %vm1446, %v737, 0
        %v1472 = vsel %vm1446, %v738, 0
        %v1475 = vsel %vm1446, %v739, 0
        %v1478 = vsel %vm1446, %v740, 0
        %v1481 = vsel %vm1446, %v741, 0
        %v1484 = vsel %vm1446, %v742, 0
        %v1487 = vsel %vm1446, %v743, 0
        %v1490 = vsel %vm1446, %v744, 0
        %v1493 = vsel %vm1446, %v745, 0
        %1495 = vmatprep.subr.mxu0 0.0
        %1496 = vmatpush1.msra.mxu0 %v1443
        %1497 = vmatprep.subr.mxu0 0.0
        %1498 = vmatpush1.msra.mxu0 %v1444
        %1499 = vmatprep.subr.mxu0 0.0
        %1500 = vmatpush1.msra.mxu0 %v1445
        %1501 = vmatprep.subr.mxu0 0.0
        %1502 = vmatpush1.msra.mxu0 0.0
        %1503 = vmatprep.subr.mxu0 0.0
        %1504 = vmatpush1.msra.mxu0 0.0
        %1505 = vmatprep.subr.mxu0 0.0
        %1506 = vmatpush1.msra.mxu0 0.0
        %1507 = vmatprep.subr.mxu0 0.0
        %1508 = vmatpush1.msra.mxu0 0.0
        %1509 = vmatprep.subr.mxu0 0.0
        %1510 = vmatpush1.msra.mxu0 0.0
        %1511 = vmatprep.subr.mxu0 0.0
        %1512 = vmatpush1.msra.mxu0 0.0
        %1513 = vmatprep.subr.mxu0 0.0
        %1514 = vmatpush1.msra.mxu0 0.0
        %1515 = vmatprep.subr.mxu0 0.0
        %1516 = vmatpush1.msra.mxu0 0.0
        %1517 = vmatprep.subr.mxu0 0.0
        %1518 = vmatpush1.msra.mxu0 0.0
        %1519 = vmatprep.subr.mxu0 0.0
        %1520 = vmatpush1.msra.mxu0 0.0
        %1521 = vmatprep.subr.mxu0 0.0
        %1522 = vmatpush1.msra.mxu0 0.0
        %1523 = vmatprep.subr.mxu0 0.0
        %1524 = vmatpush1.msra.mxu0 0.0
        %1525 = vmatprep.subr.mxu0 0.0
        %1526 = vmatpush1.msra.mxu0 0.0
        %1527 = vmatprep.subr.mxu0 0.0
        %1528 = vmatpush1.msra.mxu0 0.0
        %1529 = vmatprep.subr.mxu0 0.0
        %1530 = vmatpush1.msra.mxu0 0.0
        %1531 = vmatprep.subr.mxu0 0.0
        %1532 = vmatpush1.msra.mxu0 0.0
        %1533 = vmatprep.subr.mxu0 0.0
        %1534 = vmatpush1.msra.mxu0 0.0
        %1535 = vmatprep.subr.mxu0 0.0
        %1536 = vmatpush1.msra.mxu0 0.0
        %1537 = vmatprep.subr.mxu0 0.0
        %1538 = vmatpush1.msra.mxu0 0.0
        %1539 = vmatprep.subr.mxu0 0.0
        %1540 = vmatpush1.msra.mxu0 0.0
        %1541 = vmatprep.subr.mxu0 0.0
        %1542 = vmatpush1.msra.mxu0 0.0
        %1543 = vmatprep.subr.mxu0 0.0
        %1544 = vmatpush1.msra.mxu0 0.0
        %1545 = vmatprep.subr.mxu0 0.0
        %1546 = vmatpush1.msra.mxu0 0.0
        %1547 = vmatprep.subr.mxu0 0.0
        %1548 = vmatpush1.msra.mxu0 0.0
        %1549 = vmatprep.subr.mxu0 0.0
        %1550 = vmatpush1.msra.mxu0 0.0
        %1551 = vmatprep.subr.mxu0 0.0
        %1552 = vmatpush1.msra.mxu0 0.0
        %1553 = vmatprep.subr.mxu0 0.0
        %1554 = vmatpush1.msra.mxu0 0.0
        %1555 = vmatprep.subr.mxu0 0.0
        %1556 = vmatpush1.msra.mxu0 0.0
        %1557 = vmatprep.subr.mxu0 0.0
        %1558 = vmatpush1.msra.mxu0 0.0
        %1559 = vmatprep.mubr.f32.mxu0 0.0
        %1560 = vmatmul.mubr.f32.gmra.mrb[0].mxu0 %v1448
        %v1561 = vpop.f32.mrb[0].mxu0
        %v1562 = vadd.f32 0.0, %v1561
        %v1563 = vpop.f32.mrb[0].mxu0
        %1564 = vmatprep.mubr.f32.mxu0 0.0
        %1565 = vmatmul.mubr.f32.gmra.mrb[0].mxu0 %v1451
        %v1566 = vpop.f32.mrb[0].mxu0
        %v1567 = vadd.f32 0.0, %v1566
        %v1568 = vpop.f32.mrb[0].mxu0
        %1569 = vmatprep.mubr.f32.mxu0 0.0
        %1570 = vmatmul.mubr.f32.gmra.mrb[0].mxu0 %v1454
        %v1571 = vpop.f32.mrb[0].mxu0
        %v1572 = vadd.f32 0.0, %v1571
        %v1573 = vpop.f32.mrb[0].mxu0
        %1574 = vmatprep.mubr.f32.mxu0 0.0
        %1575 = vmatmul.mubr.f32.gmra.mrb[0].mxu0 %v1457
        %v1576 = vpop.f32.mrb[0].mxu0
        %v1577 = vadd.f32 0.0, %v1576
        %v1578 = vpop.f32.mrb[0].mxu0
        %1579 = vmatprep.mubr.f32.mxu0 0.0
        %1580 = vmatmul.mubr.f32.gmra.mrb[0].mxu0 %v1460
        %v1581 = vpop.f32.mrb[0].mxu0
        %v1582 = vadd.f32 0.0, %v1581
        %v1583 = vpop.f32.mrb[0].mxu0
        %1584 = vmatprep.mubr.f32.mxu0 0.0
        %1585 = vmatmul.mubr.f32.gmra.mrb[0].mxu0 %v1463
        %v1586 = vpop.f32.mrb[0].mxu0
        %v1587 = vadd.f32 0.0, %v1586
        %v1588 = vpop.f32.mrb[0].mxu0
        %1589 = vmatprep.mubr.f32.mxu0 0.0
        %1590 = vmatmul.mubr.f32.gmra.mrb[0].mxu0 %v1466
        %v1591 = vpop.f32.mrb[0].mxu0
        %v1592 = vadd.f32 0.0, %v1591
        %v1593 = vpop.f32.mrb[0].mxu0
        %1594 = vmatprep.mubr.f32.mxu0 0.0
        %1595 = vmatmul.mubr.f32.gmra.mrb[0].mxu0 %v1469
        %v1596 = vpop.f32.mrb[0].mxu0
        %v1597 = vadd.f32 0.0, %v1596
        %v1598 = vpop.f32.mrb[0].mxu0
        %1599 = vmatprep.mubr.f32.mxu0 0.0
        %1600 = vmatmul.mubr.f32.gmra.mrb[0].mxu0 %v1472
        %v1601 = vpop.f32.mrb[0].mxu0
        %v1602 = vadd.f32 0.0, %v1601
        %v1603 = vpop.f32.mrb[0].mxu0
        %1604 = vmatprep.mubr.f32.mxu0 0.0
        %1605 = vmatmul.mubr.f32.gmra.mrb[0].mxu0 %v1475
        %v1606 = vpop.f32.mrb[0].mxu0
        %v1607 = vadd.f32 0.0, %v1606
        %v1608 = vpop.f32.mrb[0].mxu0
        %1609 = vmatprep.mubr.f32.mxu0 0.0
        %1610 = vmatmul.mubr.f32.gmra.mrb[0].mxu0 %v1478
        %v1611 = vpop.f32.mrb[0].mxu0
        %v1612 = vadd.f32 0.0, %v1611
        %v1613 = vpop.f32.mrb[0].mxu0
        %1614 = vmatprep.mubr.f32.mxu0 0.0
        %1615 = vmatmul.mubr.f32.gmra.mrb[0].mxu0 %v1481
        %v1616 = vpop.f32.mrb[0].mxu0
        %v1617 = vadd.f32 0.0, %v1616
        %v1618 = vpop.f32.mrb[0].mxu0
        %1619 = vmatprep.mubr.f32.mxu0 0.0
        %1620 = vmatmul.mubr.f32.gmra.mrb[0].mxu0 %v1484
        %v1621 = vpop.f32.mrb[0].mxu0
        %v1622 = vadd.f32 0.0, %v1621
        %v1623 = vpop.f32.mrb[0].mxu0
        %1624 = vmatprep.mubr.f32.mxu0 0.0
        %1625 = vmatmul.mubr.f32.gmra.mrb[0].mxu0 %v1487
        %v1626 = vpop.f32.mrb[0].mxu0
        %v1627 = vadd.f32 0.0, %v1626
        %v1628 = vpop.f32.mrb[0].mxu0
        %1629 = vmatprep.mubr.f32.mxu0 0.0
        %1630 = vmatmul.mubr.f32.gmra.mrb[0].mxu0 %v1490
        %v1631 = vpop.f32.mrb[0].mxu0
        %v1632 = vadd.f32 0.0, %v1631
        %v1633 = vpop.f32.mrb[0].mxu0
        %1634 = vmatprep.mubr.f32.mxu0 0.0
        %1635 = vmatmul.mubr.f32.gmra.mrb[0].mxu0 %v1493
        %v1636 = vpop.f32.mrb[0].mxu0
        %v1637 = vadd.f32 0.0, %v1636
        %v1638 = vpop.f32.mrb[0].mxu0
        %1639 = vdwg.mxu0
        %1640 = vmatprep.subr.mxu0 0.0
        %1641 = vmatpush1.msra.mxu0 %v1423
        %1642 = vmatprep.subr.mxu0 0.0
        %1643 = vmatpush1.msra.mxu0 %v1425
        %1644 = vmatprep.subr.mxu0 0.0
        %1645 = vmatpush1.msra.mxu0 %v1427
        %1646 = vmatprep.subr.mxu0 0.0
        %1647 = vmatpush1.msra.mxu0 0.0
        %1648 = vmatprep.subr.mxu0 0.0
        %1649 = vmatpush1.msra.mxu0 0.0
        %1650 = vmatprep.subr.mxu0 0.0
        %1651 = vmatpush1.msra.mxu0 0.0
        %1652 = vmatprep.subr.mxu0 0.0
        %1653 = vmatpush1.msra.mxu0 0.0
        %1654 = vmatprep.subr.mxu0 0.0
        %1655 = vmatpush1.msra.mxu0 0.0
        %1656 = vmatprep.subr.mxu0 0.0
        %1657 = vmatpush1.msra.mxu0 0.0
        %1658 = vmatprep.subr.mxu0 0.0
        %1659 = vmatpush1.msra.mxu0 0.0
        %1660 = vmatprep.subr.mxu0 0.0
        %1661 = vmatpush1.msra.mxu0 0.0
        %1662 = vmatprep.subr.mxu0 0.0
        %1663 = vmatpush1.msra.mxu0 0.0
        %1664 = vmatprep.subr.mxu0 0.0
        %1665 = vmatpush1.msra.mxu0 0.0
        %1666 = vmatprep.subr.mxu0 0.0
        %1667 = vmatpush1.msra.mxu0 0.0
        %1668 = vmatprep.subr.mxu0 0.0
        %1669 = vmatpush1.msra.mxu0 0.0
        %1670 = vmatprep.subr.mxu0 0.0
        %1671 = vmatpush1.msra.mxu0 0.0
        %1672 = vmatprep.subr.mxu0 0.0
        %1673 = vmatpush1.msra.mxu0 0.0
        %1674 = vmatprep.subr.mxu0 0.0
        %1675 = vmatpush1.msra.mxu0 0.0
        %1676 = vmatprep.subr.mxu0 0.0
        %1677 = vmatpush1.msra.mxu0 0.0
        %1678 = vmatprep.subr.mxu0 0.0
        %1679 = vmatpush1.msra.mxu0 0.0
        %1680 = vmatprep.subr.mxu0 0.0
        %1681 = vmatpush1.msra.mxu0 0.0
        %1682 = vmatprep.subr.mxu0 0.0
        %1683 = vmatpush1.msra.mxu0 0.0
        %1684 = vmatprep.subr.mxu0 0.0
        %1685 = vmatpush1.msra.mxu0 0.0
        %1686 = vmatprep.subr.mxu0 0.0
        %1687 = vmatpush1.msra.mxu0 0.0
        %1688 = vmatprep.subr.mxu0 0.0
        %1689 = vmatpush1.msra.mxu0 0.0
        %1690 = vmatprep.subr.mxu0 0.0
        %1691 = vmatpush1.msra.mxu0 0.0
        %1692 = vmatprep.subr.mxu0 0.0
        %1693 = vmatpush1.msra.mxu0 0.0
        %1694 = vmatprep.subr.mxu0 0.0
        %1695 = vmatpush1.msra.mxu0 0.0
        %1696 = vmatprep.subr.mxu0 0.0
        %1697 = vmatpush1.msra.mxu0 0.0
        %1698 = vmatprep.subr.mxu0 0.0
        %1699 = vmatpush1.msra.mxu0 0.0
        %1700 = vmatprep.subr.mxu0 0.0
        %1701 = vmatpush1.msra.mxu0 0.0
        %1702 = vmatprep.subr.mxu0 0.0
        %1703 = vmatpush1.msra.mxu0 0.0
        %1704 = vmatprep.mubr.f32.mxu0 0.0
        %1705 = vmatmul.mubr.f32.gmra.mrb[0].mxu0 %v1448
        %v1706 = vpop.f32.mrb[0].mxu0
        %v1707 = vadd.f32 0.0, %v1706
        %v1708 = vpop.f32.mrb[0].mxu0
        %1709 = vmatprep.mubr.f32.mxu0 0.0
        %1710 = vmatmul.mubr.f32.gmra.mrb[0].mxu0 %v1451
        %v1711 = vpop.f32.mrb[0].mxu0
        %v1712 = vadd.f32 0.0, %v1711
        %v1713 = vpop.f32.mrb[0].mxu0
        %1714 = vmatprep.mubr.f32.mxu0 0.0
        %1715 = vmatmul.mubr.f32.gmra.mrb[0].mxu0 %v1454
        %v1716 = vpop.f32.mrb[0].mxu0
        %v1717 = vadd.f32 0.0, %v1716
        %v1718 = vpop.f32.mrb[0].mxu0
        %1719 = vmatprep.mubr.f32.mxu0 0.0
        %1720 = vmatmul.mubr.f32.gmra.mrb[0].mxu0 %v1457
        %v1721 = vpop.f32.mrb[0].mxu0
        %v1722 = vadd.f32 0.0, %v1721
        %v1723 = vpop.f32.mrb[0].mxu0
        %1724 = vmatprep.mubr.f32.mxu0 0.0
        %1725 = vmatmul.mubr.f32.gmra.mrb[0].mxu0 %v1460
        %v1726 = vpop.f32.mrb[0].mxu0
        %v1727 = vadd.f32 0.0, %v1726
        %v1728 = vpop.f32.mrb[0].mxu0
        %1729 = vmatprep.mubr.f32.mxu0 0.0
        %1730 = vmatmul.mubr.f32.gmra.mrb[0].mxu0 %v1463
        %v1731 = vpop.f32.mrb[0].mxu0
        %v1732 = vadd.f32 0.0, %v1731
        %v1733 = vpop.f32.mrb[0].mxu0
        %1734 = vmatprep.mubr.f32.mxu0 0.0
        %1735 = vmatmul.mubr.f32.gmra.mrb[0].mxu0 %v1466
        %v1736 = vpop.f32.mrb[0].mxu0
        %v1737 = vadd.f32 0.0, %v1736
        %v1738 = vpop.f32.mrb[0].mxu0
        %1739 = vmatprep.mubr.f32.mxu0 0.0
        %1740 = vmatmul.mubr.f32.gmra.mrb[0].mxu0 %v1469
        %v1741 = vpop.f32.mrb[0].mxu0
        %v1742 = vadd.f32 0.0, %v1741
        %v1743 = vpop.f32.mrb[0].mxu0
        %1744 = vmatprep.mubr.f32.mxu0 0.0
        %1745 = vmatmul.mubr.f32.gmra.mrb[0].mxu0 %v1472
        %v1746 = vpop.f32.mrb[0].mxu0
        %v1747 = vadd.f32 0.0, %v1746
        %v1748 = vpop.f32.mrb[0].mxu0
        %1749 = vmatprep.mubr.f32.mxu0 0.0
        %1750 = vmatmul.mubr.f32.gmra.mrb[0].mxu0 %v1475
        %v1751 = vpop.f32.mrb[0].mxu0
        %v1752 = vadd.f32 0.0, %v1751
        %v1753 = vpop.f32.mrb[0].mxu0
        %1754 = vmatprep.mubr.f32.mxu0 0.0
        %1755 = vmatmul.mubr.f32.gmra.mrb[0].mxu0 %v1478
        %v1756 = vpop.f32.mrb[0].mxu0
        %v1757 = vadd.f32 0.0, %v1756
        %v1758 = vpop.f32.mrb[0].mxu0
        %1759 = vmatprep.mubr.f32.mxu0 0.0
        %1760 = vmatmul.mubr.f32.gmra.mrb[0].mxu0 %v1481
        %v1761 = vpop.f32.mrb[0].mxu0
        %v1762 = vadd.f32 0.0, %v1761
        %v1763 = vpop.f32.mrb[0].mxu0
        %1764 = vmatprep.mubr.f32.mxu0 0.0
        %1765 = vmatmul.mubr.f32.gmra.mrb[0].mxu0 %v1484
        %v1766 = vpop.f32.mrb[0].mxu0
        %v1767 = vadd.f32 0.0, %v1766
        %v1768 = vpop.f32.mrb[0].mxu0
        %1769 = vmatprep.mubr.f32.mxu0 0.0
        %1770 = vmatmul.mubr.f32.gmra.mrb[0].mxu0 %v1487
        %v1771 = vpop.f32.mrb[0].mxu0
        %v1772 = vadd.f32 0.0, %v1771
        %v1773 = vpop.f32.mrb[0].mxu0
        %1774 = vmatprep.mubr.f32.mxu0 0.0
        %1775 = vmatmul.mubr.f32.gmra.mrb[0].mxu0 %v1490
        %v1776 = vpop.f32.mrb[0].mxu0
        %v1777 = vadd.f32 0.0, %v1776
        %v1778 = vpop.f32.mrb[0].mxu0
        %1779 = vmatprep.mubr.f32.mxu0 0.0
        %1780 = vmatmul.mubr.f32.gmra.mrb[0].mxu0 %v1493
        %v1781 = vpop.f32.mrb[0].mxu0
        %v1782 = vadd.f32 0.0, %v1781
        %v1783 = vpop.f32.mrb[0].mxu0
        %1784 = vdwg.mxu0
        %v1785 = vmax.f32 %v1707, 1e-30
        %v1786 = vmax.f32 %v1712, 1e-30
        %v1787 = vmax.f32 %v1717, 1e-30
        %v1788 = vmax.f32 %v1722, 1e-30
        %v1789 = vmax.f32 %v1727, 1e-30
        %v1790 = vmax.f32 %v1732, 1e-30
        %v1791 = vmax.f32 %v1737, 1e-30
        %v1792 = vmax.f32 %v1742, 1e-30
        %v1793 = vmax.f32 %v1747, 1e-30
        %v1794 = vmax.f32 %v1752, 1e-30
        %v1795 = vmax.f32 %v1757, 1e-30
        %v1796 = vmax.f32 %v1762, 1e-30
        %v1797 = vmax.f32 %v1767, 1e-30
        %v1798 = vmax.f32 %v1772, 1e-30
        %v1799 = vmax.f32 %v1777, 1e-30
        %v1800 = vmax.f32 %v1782, 1e-30
        %1802 = vset.pattern.permute.xlu0 0
        %1803 = vperm.xlu0 %1802, %v1785
        %v1804 = vpop.permute.xlu0 %1803
        %1807 = vset.pattern.permute.xlu0 0
        %1808 = vperm.xlu0 %1807, %v1786
        %v1809 = vpop.permute.xlu0 %1808
        %1812 = vset.pattern.permute.xlu0 0
        %1813 = vperm.xlu0 %1812, %v1787
        %v1814 = vpop.permute.xlu0 %1813
        %1817 = vset.pattern.permute.xlu0 0
        %1818 = vperm.xlu0 %1817, %v1788
        %v1819 = vpop.permute.xlu0 %1818
        %1822 = vset.pattern.permute.xlu0 0
        %1823 = vperm.xlu0 %1822, %v1789
        %v1824 = vpop.permute.xlu0 %1823
        %1827 = vset.pattern.permute.xlu0 0
        %1828 = vperm.xlu0 %1827, %v1790
        %v1829 = vpop.permute.xlu0 %1828
        %1832 = vset.pattern.permute.xlu0 0
        %1833 = vperm.xlu0 %1832, %v1791
        %v1834 = vpop.permute.xlu0 %1833
        %1837 = vset.pattern.permute.xlu0 0
        %1838 = vperm.xlu0 %1837, %v1792
        %v1839 = vpop.permute.xlu0 %1838
        %1842 = vset.pattern.permute.xlu0 0
        %1843 = vperm.xlu0 %1842, %v1793
        %v1844 = vpop.permute.xlu0 %1843
        %1847 = vset.pattern.permute.xlu0 0
        %1848 = vperm.xlu0 %1847, %v1794
        %v1849 = vpop.permute.xlu0 %1848
        %1852 = vset.pattern.permute.xlu0 0
        %1853 = vperm.xlu0 %1852, %v1795
        %v1854 = vpop.permute.xlu0 %1853
        %1857 = vset.pattern.permute.xlu0 0
        %1858 = vperm.xlu0 %1857, %v1796
        %v1859 = vpop.permute.xlu0 %1858
        %1862 = vset.pattern.permute.xlu0 0
        %1863 = vperm.xlu0 %1862, %v1797
        %v1864 = vpop.permute.xlu0 %1863
        %1867 = vset.pattern.permute.xlu0 0
        %1868 = vperm.xlu0 %1867, %v1798
        %v1869 = vpop.permute.xlu0 %1868
        %1872 = vset.pattern.permute.xlu0 0
        %1873 = vperm.xlu0 %1872, %v1799
        %v1874 = vpop.permute.xlu0 %1873
        %1877 = vset.pattern.permute.xlu0 0
        %1878 = vperm.xlu0 %1877, %v1800
        %v1879 = vpop.permute.xlu0 %1878
        %v1881 = vrcp.pop %v1804
        %v1882 = vmul.f32 %v1562, %v1881
        %v1883 = vrcp.pop %v1809
        %v1884 = vmul.f32 %v1567, %v1883
        %v1885 = vrcp.pop %v1814
        %v1886 = vmul.f32 %v1572, %v1885
        %v1887 = vrcp.pop %v1819
        %v1888 = vmul.f32 %v1577, %v1887
        %v1889 = vrcp.pop %v1824
        %v1890 = vmul.f32 %v1582, %v1889
        %v1891 = vrcp.pop %v1829
        %v1892 = vmul.f32 %v1587, %v1891
        %v1893 = vrcp.pop %v1834
        %v1894 = vmul.f32 %v1592, %v1893
        %v1895 = vrcp.pop %v1839
        %v1896 = vmul.f32 %v1597, %v1895
        %v1897 = vrcp.pop %v1844
        %v1898 = vmul.f32 %v1602, %v1897
        %v1899 = vrcp.pop %v1849
        %v1900 = vmul.f32 %v1607, %v1899
        %v1901 = vrcp.pop %v1854
        %v1902 = vmul.f32 %v1612, %v1901
        %v1903 = vrcp.pop %v1859
        %v1904 = vmul.f32 %v1617, %v1903
        %v1905 = vrcp.pop %v1864
        %v1906 = vmul.f32 %v1622, %v1905
        %v1907 = vrcp.pop %v1869
        %v1908 = vmul.f32 %v1627, %v1907
        %v1909 = vrcp.pop %v1874
        %v1910 = vmul.f32 %v1632, %v1909
        %v1911 = vrcp.pop %v1879
        %v1912 = vmul.f32 %v1637, %v1911
        %v1913 = vld [vmem:[%s11] sm:$0x1]
        %v1915 = vlaneseq
        %v1916 = vshrl.u32 %v1915, 7
        %v1917 = vsub.s32 0, %v1916
        %v1918 = vrot.slane %v1913, %v1917
        %v1920 = vadd.f32 %v1882, %v1918
        %v1921 = vadd.f32 %v1884, %v1918
        %v1922 = vadd.f32 %v1886, %v1918
        %v1923 = vadd.f32 %v1888, %v1918
        %v1924 = vadd.f32 %v1890, %v1918
        %v1925 = vadd.f32 %v1892, %v1918
        %v1926 = vadd.f32 %v1894, %v1918
        %v1927 = vadd.f32 %v1896, %v1918
        %v1928 = vadd.f32 %v1898, %v1918
        %v1929 = vadd.f32 %v1900, %v1918
        %v1930 = vadd.f32 %v1902, %v1918
        %v1931 = vadd.f32 %v1904, %v1918
        %v1932 = vadd.f32 %v1906, %v1918
        %v1933 = vadd.f32 %v1908, %v1918
        %v1934 = vadd.f32 %v1910, %v1918
        %v1935 = vadd.f32 %v1912, %v1918
        %v1936 = vmax.f32 %v1920, 0.0
        %v1937 = vmax.f32 %v1921, 0.0
        %v1938 = vmax.f32 %v1922, 0.0
        %v1939 = vmax.f32 %v1923, 0.0
        %v1940 = vmax.f32 %v1924, 0.0
        %v1941 = vmax.f32 %v1925, 0.0
        %v1942 = vmax.f32 %v1926, 0.0
        %v1943 = vmax.f32 %v1927, 0.0
        %v1944 = vmax.f32 %v1928, 0.0
        %v1945 = vmax.f32 %v1929, 0.0
        %v1946 = vmax.f32 %v1930, 0.0
        %v1947 = vmax.f32 %v1931, 0.0
        %v1948 = vmax.f32 %v1932, 0.0
        %v1949 = vmax.f32 %v1933, 0.0
        %v1950 = vmax.f32 %v1934, 0.0
        %v1951 = vmax.f32 %v1935, 0.0
        %v1952 = vld [vmem:[%s12] sm:$0x1]
        %v1954 = vlaneseq
        %v1955 = vshrl.u32 %v1954, 7
        %v1956 = vsub.s32 0, %v1955
        %v1957 = vrot.slane %v1952, %v1956
        %v1959 = vmul.f32 %v1936, %v1957
        %v1960 = vmul.f32 %v1937, %v1957
        %v1961 = vmul.f32 %v1938, %v1957
        %v1962 = vmul.f32 %v1939, %v1957
        %v1963 = vmul.f32 %v1940, %v1957
        %v1964 = vmul.f32 %v1941, %v1957
        %v1965 = vmul.f32 %v1942, %v1957
        %v1966 = vmul.f32 %v1943, %v1957
        %v1967 = vmul.f32 %v1944, %v1957
        %v1968 = vmul.f32 %v1945, %v1957
        %v1969 = vmul.f32 %v1946, %v1957
        %v1970 = vmul.f32 %v1947, %v1957
        %v1971 = vmul.f32 %v1948, %v1957
        %v1972 = vmul.f32 %v1949, %v1957
        %v1973 = vmul.f32 %v1950, %v1957
        %v1974 = vmul.f32 %v1951, %v1957
        %v1975 = vsel %vm1116, %v1959, 0.0
        %1976 = vadd.xlane.f32.xlu0 %v1975
        %v1977 = vpop.xlane.xlu0 %1976
        %v1978 = vsel %vm1116, %v1960, 0.0
        %1979 = vadd.xlane.f32.xlu0 %v1978
        %v1980 = vpop.xlane.xlu0 %1979
        %v1981 = vsel %vm1116, %v1961, 0.0
        %1982 = vadd.xlane.f32.xlu0 %v1981
        %v1983 = vpop.xlane.xlu0 %1982
        %v1984 = vsel %vm1116, %v1962, 0.0
        %1985 = vadd.xlane.f32.xlu0 %v1984
        %v1986 = vpop.xlane.xlu0 %1985
        %v1987 = vsel %vm1116, %v1963, 0.0
        %1988 = vadd.xlane.f32.xlu0 %v1987
        %v1989 = vpop.xlane.xlu0 %1988
        %v1990 = vsel %vm1116, %v1964, 0.0
        %1991 = vadd.xlane.f32.xlu0 %v1990
        %v1992 = vpop.xlane.xlu0 %1991
        %v1993 = vsel %vm1116, %v1965, 0.0
        %1994 = vadd.xlane.f32.xlu0 %v1993
        %v1995 = vpop.xlane.xlu0 %1994
        %v1996 = vsel %vm1116, %v1966, 0.0
        %1997 = vadd.xlane.f32.xlu0 %v1996
        %v1998 = vpop.xlane.xlu0 %1997
        %v1999 = vsel %vm1116, %v1967, 0.0
        %2000 = vadd.xlane.f32.xlu0 %v1999
        %v2001 = vpop.xlane.xlu0 %2000
        %v2002 = vsel %vm1116, %v1968, 0.0
        %2003 = vadd.xlane.f32.xlu0 %v2002
        %v2004 = vpop.xlane.xlu0 %2003
        %v2005 = vsel %vm1116, %v1969, 0.0
        %2006 = vadd.xlane.f32.xlu0 %v2005
        %v2007 = vpop.xlane.xlu0 %2006
        %v2008 = vsel %vm1116, %v1970, 0.0
        %2009 = vadd.xlane.f32.xlu0 %v2008
        %v2010 = vpop.xlane.xlu0 %2009
        %v2011 = vsel %vm1116, %v1971, 0.0
        %2012 = vadd.xlane.f32.xlu0 %v2011
        %v2013 = vpop.xlane.xlu0 %2012
        %v2014 = vsel %vm1116, %v1972, 0.0
        %2015 = vadd.xlane.f32.xlu0 %v2014
        %v2016 = vpop.xlane.xlu0 %2015
        %v2017 = vsel %vm1116, %v1973, 0.0
        %2018 = vadd.xlane.f32.xlu0 %v2017
        %v2019 = vpop.xlane.xlu0 %2018
        %v2020 = vsel %vm1116, %v1974, 0.0
        %2021 = vadd.xlane.f32.xlu0 %v2020
        %v2022 = vpop.xlane.xlu0 %2021
        %v2023 = vld [vmem:[#allocation2] sm:$0x1]
        %v2025 = vlaneseq
        %v2026 = vshrl.u32 %v2025, 7
        %v2027 = vsub.s32 0, %v2026
        %v2028 = vrot.slane %v2023, %v2027
        %v2030 = vadd.f32 %v1977, %v2028
        %v2031 = vadd.f32 %v1980, %v2028
        %v2032 = vadd.f32 %v1983, %v2028
        %v2033 = vadd.f32 %v1986, %v2028
        %v2034 = vadd.f32 %v1989, %v2028
        %v2035 = vadd.f32 %v1992, %v2028
        %v2036 = vadd.f32 %v1995, %v2028
        %v2037 = vadd.f32 %v1998, %v2028
        %v2038 = vadd.f32 %v2001, %v2028
        %v2039 = vadd.f32 %v2004, %v2028
        %v2040 = vadd.f32 %v2007, %v2028
        %v2041 = vadd.f32 %v2010, %v2028
        %v2042 = vadd.f32 %v2013, %v2028
        %v2043 = vadd.f32 %v2016, %v2028
        %v2044 = vadd.f32 %v2019, %v2028
        %v2045 = vadd.f32 %v2022, %v2028
        %v2046 = vsub.f32 %v782, 1.0
        %v2047 = vsub.f32 %v783, 1.0
        %v2048 = vsub.f32 %v784, 1.0
        %v2049 = vsub.f32 %v785, 1.0
        %v2050 = vsub.f32 %v786, 1.0
        %v2051 = vsub.f32 %v787, 1.0
        %v2052 = vsub.f32 %v788, 1.0
        %v2053 = vsub.f32 %v789, 1.0
        %v2054 = vsub.f32 %v790, 1.0
        %v2055 = vsub.f32 %v791, 1.0
        %v2056 = vsub.f32 %v792, 1.0
        %v2057 = vsub.f32 %v793, 1.0
        %v2058 = vsub.f32 %v794, 1.0
        %v2059 = vsub.f32 %v795, 1.0
        %v2060 = vsub.f32 %v796, 1.0
        %v2061 = vsub.f32 %v797, 1.0
        %v2062 = vmul.f32 %v2046, 1e+30
        %v2063 = vmul.f32 %v2047, 1e+30
        %v2064 = vmul.f32 %v2048, 1e+30
        %v2065 = vmul.f32 %v2049, 1e+30
        %v2066 = vmul.f32 %v2050, 1e+30
        %v2067 = vmul.f32 %v2051, 1e+30
        %v2068 = vmul.f32 %v2052, 1e+30
        %v2069 = vmul.f32 %v2053, 1e+30
        %v2070 = vmul.f32 %v2054, 1e+30
        %v2071 = vmul.f32 %v2055, 1e+30
        %v2072 = vmul.f32 %v2056, 1e+30
        %v2073 = vmul.f32 %v2057, 1e+30
        %v2074 = vmul.f32 %v2058, 1e+30
        %v2075 = vmul.f32 %v2059, 1e+30
        %v2076 = vmul.f32 %v2060, 1e+30
        %v2077 = vmul.f32 %v2061, 1e+30
        %v2078 = vadd.f32 %v2030, %v2062
        %v2079 = vadd.f32 %v2031, %v2063
        %v2080 = vadd.f32 %v2032, %v2064
        %v2081 = vadd.f32 %v2033, %v2065
        %v2082 = vadd.f32 %v2034, %v2066
        %v2083 = vadd.f32 %v2035, %v2067
        %v2084 = vadd.f32 %v2036, %v2068
        %v2085 = vadd.f32 %v2037, %v2069
        %v2086 = vadd.f32 %v2038, %v2070
        %v2087 = vadd.f32 %v2039, %v2071
        %v2088 = vadd.f32 %v2040, %v2072
        %v2089 = vadd.f32 %v2041, %v2073
        %v2090 = vadd.f32 %v2042, %v2074
        %v2091 = vadd.f32 %v2043, %v2075
        %v2092 = vadd.f32 %v2044, %v2076
        %v2093 = vadd.f32 %v2045, %v2077
        %vm2094 = vcmask 7168
        %v2095 = vsel %vm2094, %v2078, -inf
        %v2096 = vsel %vm2094, %v2079, -inf
        %v2097 = vsel %vm2094, %v2080, -inf
        %v2098 = vsel %vm2094, %v2081, -inf
        %v2099 = vsel %vm2094, %v2082, -inf
        %v2100 = vmax.f32 %v2095, %v2099
        %v2101 = vsel %vm2094, %v2083, -inf
        %v2102 = vmax.f32 %v2096, %v2101
        %v2103 = vsel %vm2094, %v2084, -inf
        %v2104 = vmax.f32 %v2097, %v2103
        %v2105 = vsel %vm2094, %v2085, -inf
        %v2106 = vmax.f32 %v2098, %v2105
        %v2107 = vsel %vm2094, %v2086, -inf
        %v2108 = vmax.f32 %v2100, %v2107
        %v2109 = vsel %vm2094, %v2087, -inf
        %v2110 = vmax.f32 %v2102, %v2109
        %v2111 = vsel %vm2094, %v2088, -inf
        %v2112 = vmax.f32 %v2104, %v2111
        %v2113 = vsel %vm2094, %v2089, -inf
        %v2114 = vmax.f32 %v2106, %v2113
        %v2115 = vsel %vm2094, %v2090, -inf
        %v2116 = vmax.f32 %v2108, %v2115
        %v2117 = vsel %vm2094, %v2091, -inf
        %v2118 = vmax.f32 %v2110, %v2117
        %v2119 = vsel %vm2094, %v2092, -inf
        %v2120 = vmax.f32 %v2112, %v2119
        %v2121 = vsel %vm2094, %v2093, -inf
        %v2122 = vmax.f32 %v2114, %v2121
        %v2123 = vmax.f32 %v2116, %v2118
        %v2124 = vmax.f32 %v2120, %v2122
        %v2125 = vmax.f32 %v2123, %v2124
        %v2126 = vrot.slane %v2125, 4
        %v2127 = vmax.f32 %v2125, %v2126
        %v2128 = vrot.slane %v2127, 2
        %v2129 = vmax.f32 %v2127, %v2128
        %v2130 = vrot.slane %v2129, 1
        %v2131 = vmax.f32 %v2129, %v2130
        %v2132 = vsub.f32 %v2030, %v2131
        %v2133 = vsub.f32 %v2031, %v2131
        %v2134 = vsub.f32 %v2032, %v2131
        %v2135 = vsub.f32 %v2033, %v2131
        %v2136 = vsub.f32 %v2034, %v2131
        %v2137 = vsub.f32 %v2035, %v2131
        %v2138 = vsub.f32 %v2036, %v2131
        %v2139 = vsub.f32 %v2037, %v2131
        %v2140 = vsub.f32 %v2038, %v2131
        %v2141 = vsub.f32 %v2039, %v2131
        %v2142 = vsub.f32 %v2040, %v2131
        %v2143 = vsub.f32 %v2041, %v2131
        %v2144 = vsub.f32 %v2042, %v2131
        %v2145 = vsub.f32 %v2043, %v2131
        %v2146 = vsub.f32 %v2044, %v2131
        %v2147 = vsub.f32 %v2045, %v2131
        %v2148 = vmin.f32 %v2132, 0.0
        %v2149 = vmin.f32 %v2133, 0.0
        %v2150 = vmin.f32 %v2134, 0.0
        %v2151 = vmin.f32 %v2135, 0.0
        %v2152 = vmin.f32 %v2136, 0.0
        %v2153 = vmin.f32 %v2137, 0.0
        %v2154 = vmin.f32 %v2138, 0.0
        %v2155 = vmin.f32 %v2139, 0.0
        %v2156 = vmin.f32 %v2140, 0.0
        %v2157 = vmin.f32 %v2141, 0.0
        %v2158 = vmin.f32 %v2142, 0.0
        %v2159 = vmin.f32 %v2143, 0.0
        %v2160 = vmin.f32 %v2144, 0.0
        %v2161 = vmin.f32 %v2145, 0.0
        %v2162 = vmin.f32 %v2146, 0.0
        %v2163 = vmin.f32 %v2147, 0.0
        %v2164 = vmul.f32 %v2148, 1.442695
        %v2165 = vpow.pop %v2164
        %v2166 = vmul.f32 %v2149, 1.442695
        %v2167 = vpow.pop %v2166
        %v2168 = vmul.f32 %v2150, 1.442695
        %v2169 = vpow.pop %v2168
        %v2170 = vmul.f32 %v2151, 1.442695
        %v2171 = vpow.pop %v2170
        %v2172 = vmul.f32 %v2152, 1.442695
        %v2173 = vpow.pop %v2172
        %v2174 = vmul.f32 %v2153, 1.442695
        %v2175 = vpow.pop %v2174
        %v2176 = vmul.f32 %v2154, 1.442695
        %v2177 = vpow.pop %v2176
        %v2178 = vmul.f32 %v2155, 1.442695
        %v2179 = vpow.pop %v2178
        %v2180 = vmul.f32 %v2156, 1.442695
        %v2181 = vpow.pop %v2180
        %v2182 = vmul.f32 %v2157, 1.442695
        %v2183 = vpow.pop %v2182
        %v2184 = vmul.f32 %v2158, 1.442695
        %v2185 = vpow.pop %v2184
        %v2186 = vmul.f32 %v2159, 1.442695
        %v2187 = vpow.pop %v2186
        %v2188 = vmul.f32 %v2160, 1.442695
        %v2189 = vpow.pop %v2188
        %v2190 = vmul.f32 %v2161, 1.442695
        %v2191 = vpow.pop %v2190
        %v2192 = vmul.f32 %v2162, 1.442695
        %v2193 = vpow.pop %v2192
        %v2194 = vmul.f32 %v2163, 1.442695
        %v2195 = vpow.pop %v2194
        %v2196 = vmul.f32 %v782, %v2165
        %v2197 = vmul.f32 %v783, %v2167
        %v2198 = vmul.f32 %v784, %v2169
        %v2199 = vmul.f32 %v785, %v2171
        %v2200 = vmul.f32 %v786, %v2173
        %v2201 = vmul.f32 %v787, %v2175
        %v2202 = vmul.f32 %v788, %v2177
        %v2203 = vmul.f32 %v789, %v2179
        %v2204 = vmul.f32 %v790, %v2181
        %v2205 = vmul.f32 %v791, %v2183
        %v2206 = vmul.f32 %v792, %v2185
        %v2207 = vmul.f32 %v793, %v2187
        %v2208 = vmul.f32 %v794, %v2189
        %v2209 = vmul.f32 %v795, %v2191
        %v2210 = vmul.f32 %v796, %v2193
        %v2211 = vmul.f32 %v797, %v2195
        %v2212 = vsel %vm2094, %v2196, 0.0
        %v2213 = vsel %vm2094, %v2197, 0.0
        %v2214 = vadd.f32 %v2212, %v2213
        %v2215 = vsel %vm2094, %v2198, 0.0
        %v2216 = vadd.f32 %v2214, %v2215
        %v2217 = vsel %vm2094, %v2199, 0.0
        %v2218 = vadd.f32 %v2216, %v2217
        %v2219 = vsel %vm2094, %v2200, 0.0
        %v2220 = vadd.f32 %v2218, %v2219
        %v2221 = vsel %vm2094, %v2201, 0.0
        %v2222 = vadd.f32 %v2220, %v2221
        %v2223 = vsel %vm2094, %v2202, 0.0
        %v2224 = vadd.f32 %v2222, %v2223
        %v2225 = vsel %vm2094, %v2203, 0.0
        %v2226 = vadd.f32 %v2224, %v2225
        %v2227 = vsel %vm2094, %v2204, 0.0
        %v2228 = vadd.f32 %v2226, %v2227
        %v2229 = vsel %vm2094, %v2205, 0.0
        %v2230 = vadd.f32 %v2228, %v2229
        %v2231 = vsel %vm2094, %v2206, 0.0
        %v2232 = vadd.f32 %v2230, %v2231
        %v2233 = vsel %vm2094, %v2207, 0.0
        %v2234 = vadd.f32 %v2232, %v2233
        %v2235 = vsel %vm2094, %v2208, 0.0
        %v2236 = vadd.f32 %v2234, %v2235
        %v2237 = vsel %vm2094, %v2209, 0.0
        %v2238 = vadd.f32 %v2236, %v2237
        %v2239 = vsel %vm2094, %v2210, 0.0
        %v2240 = vadd.f32 %v2238, %v2239
        %v2241 = vsel %vm2094, %v2211, 0.0
        %v2242 = vadd.f32 %v2240, %v2241
        %v2243 = vrot.slane %v2242, 4
        %v2244 = vadd.f32 %v2242, %v2243
        %v2245 = vrot.slane %v2244, 2
        %v2246 = vadd.f32 %v2244, %v2245
        %v2247 = vrot.slane %v2246, 1
        %v2248 = vadd.f32 %v2246, %v2247
        %v2249 = vmax.f32 %v2248, 1e-30
        %v2250 = vrcp.pop %v2249
        %v2251 = vmul.f32 %v2196, %v2250
        %v2252 = vmul.f32 %v2197, %v2250
        %v2253 = vmul.f32 %v2198, %v2250
        %v2254 = vmul.f32 %v2199, %v2250
        %v2255 = vmul.f32 %v2200, %v2250
        %v2256 = vmul.f32 %v2201, %v2250
        %v2257 = vmul.f32 %v2202, %v2250
        %v2258 = vmul.f32 %v2203, %v2250
        %v2259 = vmul.f32 %v2204, %v2250
        %v2260 = vmul.f32 %v2205, %v2250
        %v2261 = vmul.f32 %v2206, %v2250
        %v2262 = vmul.f32 %v2207, %v2250
        %v2263 = vmul.f32 %v2208, %v2250
        %v2264 = vmul.f32 %v2209, %v2250
        %v2265 = vmul.f32 %v2210, %v2250
        %v2266 = vmul.f32 %v2211, %v2250
        %2268 = vset.pattern.permute.xlu0 0
        %2269 = vperm.xlu0 %2268, %v2251
        %v2270 = vpop.permute.xlu0 %2269
        %2273 = vset.pattern.permute.xlu0 0
        %2274 = vperm.xlu0 %2273, %v2252
        %v2275 = vpop.permute.xlu0 %2274
        %2278 = vset.pattern.permute.xlu0 0
        %2279 = vperm.xlu0 %2278, %v2253
        %v2280 = vpop.permute.xlu0 %2279
        %2283 = vset.pattern.permute.xlu0 0
        %2284 = vperm.xlu0 %2283, %v2254
        %v2285 = vpop.permute.xlu0 %2284
        %2288 = vset.pattern.permute.xlu0 0
        %2289 = vperm.xlu0 %2288, %v2255
        %v2290 = vpop.permute.xlu0 %2289
        %2293 = vset.pattern.permute.xlu0 0
        %2294 = vperm.xlu0 %2293, %v2256
        %v2295 = vpop.permute.xlu0 %2294
        %2298 = vset.pattern.permute.xlu0 0
        %2299 = vperm.xlu0 %2298, %v2257
        %v2300 = vpop.permute.xlu0 %2299
        %2303 = vset.pattern.permute.xlu0 0
        %2304 = vperm.xlu0 %2303, %v2258
        %v2305 = vpop.permute.xlu0 %2304
        %2308 = vset.pattern.permute.xlu0 0
        %2309 = vperm.xlu0 %2308, %v2259
        %v2310 = vpop.permute.xlu0 %2309
        %2313 = vset.pattern.permute.xlu0 0
        %2314 = vperm.xlu0 %2313, %v2260
        %v2315 = vpop.permute.xlu0 %2314
        %2318 = vset.pattern.permute.xlu0 0
        %2319 = vperm.xlu0 %2318, %v2261
        %v2320 = vpop.permute.xlu0 %2319
        %2323 = vset.pattern.permute.xlu0 0
        %2324 = vperm.xlu0 %2323, %v2262
        %v2325 = vpop.permute.xlu0 %2324
        %2328 = vset.pattern.permute.xlu0 0
        %2329 = vperm.xlu0 %2328, %v2263
        %v2330 = vpop.permute.xlu0 %2329
        %2333 = vset.pattern.permute.xlu0 0
        %2334 = vperm.xlu0 %2333, %v2264
        %v2335 = vpop.permute.xlu0 %2334
        %2338 = vset.pattern.permute.xlu0 0
        %2339 = vperm.xlu0 %2338, %v2265
        %v2340 = vpop.permute.xlu0 %2339
        %2343 = vset.pattern.permute.xlu0 0
        %2344 = vperm.xlu0 %2343, %v2266
        %v2345 = vpop.permute.xlu0 %2344
        %v2347 = vmul.f32 %v2270, %v1936
        %v2348 = vmul.f32 %v2275, %v1937
        %v2349 = vmul.f32 %v2280, %v1938
        %v2350 = vmul.f32 %v2285, %v1939
        %v2351 = vmul.f32 %v2290, %v1940
        %v2352 = vmul.f32 %v2295, %v1941
        %v2353 = vmul.f32 %v2300, %v1942
        %v2354 = vmul.f32 %v2305, %v1943
        %v2355 = vmul.f32 %v2310, %v1944
        %v2356 = vmul.f32 %v2315, %v1945
        %v2357 = vmul.f32 %v2320, %v1946
        %v2358 = vmul.f32 %v2325, %v1947
        %v2359 = vmul.f32 %v2330, %v1948
        %v2360 = vmul.f32 %v2335, %v1949
        %v2361 = vmul.f32 %v2340, %v1950
        %v2362 = vmul.f32 %v2345, %v1951
        %v2363 = vsel %vm1116, %v2347, 0.0
        %v2364 = vsel %vm1116, %v2348, 0.0
        %v2365 = vadd.f32 %v2363, %v2364
        %v2366 = vsel %vm1116, %v2349, 0.0
        %v2367 = vadd.f32 %v2365, %v2366
        %v2368 = vsel %vm1116, %v2350, 0.0
        %v2369 = vadd.f32 %v2367, %v2368
        %v2370 = vsel %vm1116, %v2351, 0.0
        %v2371 = vadd.f32 %v2369, %v2370
        %v2372 = vsel %vm1116, %v2352, 0.0
        %v2373 = vadd.f32 %v2371, %v2372
        %v2374 = vsel %vm1116, %v2353, 0.0
        %v2375 = vadd.f32 %v2373, %v2374
        %v2376 = vsel %vm1116, %v2354, 0.0
        %v2377 = vadd.f32 %v2375, %v2376
        %v2378 = vsel %vm1116, %v2355, 0.0
        %v2379 = vadd.f32 %v2377, %v2378
        %v2380 = vsel %vm1116, %v2356, 0.0
        %v2381 = vadd.f32 %v2379, %v2380
        %v2382 = vsel %vm1116, %v2357, 0.0
        %v2383 = vadd.f32 %v2381, %v2382
        %v2384 = vsel %vm1116, %v2358, 0.0
        %v2385 = vadd.f32 %v2383, %v2384
        %v2386 = vsel %vm1116, %v2359, 0.0
        %v2387 = vadd.f32 %v2385, %v2386
        %v2388 = vsel %vm1116, %v2360, 0.0
        %v2389 = vadd.f32 %v2387, %v2388
        %v2390 = vsel %vm1116, %v2361, 0.0
        %v2391 = vadd.f32 %v2389, %v2390
        %v2392 = vsel %vm1116, %v2362, 0.0
        %v2393 = vadd.f32 %v2391, %v2392
        %v2394 = vrot.slane %v2393, 4
        %v2395 = vadd.f32 %v2393, %v2394
        %v2396 = vrot.slane %v2395, 2
        %v2397 = vadd.f32 %v2395, %v2396
        %v2398 = vrot.slane %v2397, 1
        %v2399 = vadd.f32 %v2397, %v2398
        %v2400 = vld [vmem:[%s14] sm:$0x1]
        %v2401 = vmul.f32 %v2399, %v2400
        %vm2402 = vcmask 253952
        %v2403 = vsel %vm2402, %v2401, 0.0
        %2404 = vadd.xlane.f32.xlu0 %v2403
        %v2405 = vpop.xlane.xlu0 %2404
        %v2406 = vld [vmem:[#allocation3] sm:$0x1]
        %v2407 = vadd.f32 %v2405, %v2406
        %v2408 = vsub.f32 0.0, %v2407
        %v2409 = vmul.f32 %v2408, 1.442695
        %v2410 = vpow.pop %v2409
        %v2411 = vadd.f32 %v2410, 1.0
        %v2412 = vrcp.pop %v2411
        %v2413 = vmul.f32 1.0, %v2412
        %s2415 = vtos %v2413
        %v2416 = vstv %s2415
        %2418 = vst [vmem:[%s585] sm:$0xff] %v2416
        %s2419 = sand.u32 %s408, 1
        %s2420 = scalar_lea.sflag [#allocation5], %s2419
        %s2421 = sand.u32 %s408, 1
        %s2422 = smul.addr %s2421, 8
        %s2423 = scalar_lea.vmem [#allocation4], %s2422
        // Predicated region
        $region85: #{tpu_custom_call.1} parent=83 // pred_check
          %p2424 = pneg %p418
        $region86: #{tpu_custom_call.1} parent=83 // pred_check_branch
          %2426 = sbr.rel (%p2424) target = $region88
        $region87: #{tpu_custom_call.1} parent=83 // pred_region
          %s2428 = ssub.s32 128, 128
          %2429 = vsyncadd %s2420, %s2428
          %s2430 = smul.addr %s34, 128
          %s2431 = scalar_lea.hbm %s16, %s2430
          %s2433 = sshll.u32 %s2423, 4
          %s2434 = int_to_ptr.vmem [resolvable:$true] %s2433
          %2436 = dma.vmem_to_hbm [thread:$0]  %s2434, 128, %s2431, %s2420
        $region88: #{tpu_custom_call.1} parent=83 // pred_fallthru
          _
      $region84: #{tpu_custom_call.1} parent=5 // pred_fallthru
        _
      %p2437 = scmp.le.s32.totalorder 2, %s29
      // Predicated region
      $region89: #{tpu_custom_call.1} parent=5 // pred_check
        %p2438 = pneg %p2437
      $region90: #{tpu_custom_call.1} parent=5 // pred_check_branch
        %2440 = sbr.rel (%p2438) target = $region92
      $region91: #{tpu_custom_call.1} parent=5 // pred_region
        %s2441 = ssub.s32 %s29, 2
        // Predicated region
        $region93: #{tpu_custom_call.1} parent=91 // pred_check
          %p2442 = pneg %p424
        $region94: #{tpu_custom_call.1} parent=91 // pred_check_branch
          %2444 = sbr.rel (%p2442) target = $region96
        $region95: #{tpu_custom_call.1} parent=91 // pred_region
          %s2445 = sand.u32 %s409, 1
          %s2446 = scalar_lea.sflag [#allocation5], %s2445
          %s2447 = sand.u32 %s409, 1
          %s2448 = smul.addr %s2447, 8
          %s2449 = scalar_lea.vmem [#allocation4], %s2448
          %2450 = dma.done %s2446, 128
        $region96: #{tpu_custom_call.1} parent=91 // pred_fallthru
          _
      $region92: #{tpu_custom_call.1} parent=5 // pred_fallthru
        _
    $region6: #{tpu_custom_call.1} parent=1 // loop_footer
      %s33 = sadd.s32 1, %s29
    $region7: #{tpu_custom_call.1} parent=1 // loop_footer_branch
      %28 = sbr.rel target = $region3
    $region8: #{tpu_custom_call.1} parent=1 // loop_exit
      _
    %2451 = vsyncpa [#allocation5], 1
    %s2452 = scalar_lea.sflag [#allocation5], 1
    %2453 = vsyncpa %s2452, 1

</llo_original>
